<compile_context>
chip_gen: v7x
topology: tpu7x:2x2x1
jax: 0.10.0
libtpu: 0.0.40
codegen_flags: <defaults>
</compile_context>

<pallas_src>
import numpy as np
import jax
import jax.numpy as jnp
from jax.experimental import pallas as pl
from jax.experimental.pallas import tpu as pltpu


_EXPAND_CHUNK = 2048  # lanes per gate-expansion / apply step (multiple of 128)


def coord_attention_kernel(x_ref, pool_ref, scale_ref, eh_ref, ew_ref,
                           w1_ref, b1_ref, w2_ref, b2_ref, w3_ref, b3_ref,
                           o_ref):
    H = eh_ref.shape[0]
    HW = x_ref.shape[-1]

    # ---- Coordinate pooling: one MXU matmul against a 0/1 selection matrix.
    # x_sums[:, :H] = sum over W (per h), x_sums[:, H:] = sum over H (per w).
    # x stays in its native dtype; the MXU accumulates in f32.
    x_sums = jnp.dot(x_ref[...], pool_ref[...],
                     preferred_element_type=jnp.float32)            # (C, H+W)

    # ---- conv1 (1x1, BatchNorm folded) ; the per-column 1/W, 1/H mean scale
    # commutes with the 1x1 conv, so apply it on the small (temp_c, H+W)
    # result instead of on (C, H+W). Then h_swish.
    y = jnp.dot(w1_ref[...], x_sums, preferred_element_type=jnp.float32)
    y = y * scale_ref[...] + b1_ref[...]                             # (temp_c, H+W)
    y = y * jnp.clip(y + 3.0, 0.0, 6.0) * (1.0 / 6.0)

    # ThresholdedReLU(0.1, inplace=True) aliases `out` in the PyTorch module
    # (F.threshold(..., inplace=True) returns its own input), so
    # `out + th_out` is exactly 2 * thresholded(out).
    th = jnp.where(y > 0.1, y, 0.0)
    y = th + th

    # ---- conv2 / conv3 + sigmoid as two small dots (the y[:, H:] lane slice
    # is on the tiny (temp_c, H+W) tile, so its relayout cost is negligible).
    out_h = jax.nn.sigmoid(
        jnp.dot(w2_ref[...], y[:, :H], preferred_element_type=jnp.float32)
        + b2_ref[...])                                               # (Cout, H)
    out_w = jax.nn.sigmoid(
        jnp.dot(w3_ref[...], y[:, H:], preferred_element_type=jnp.float32)
        + b3_ref[...])                                               # (Cout, W)
    out_h = out_h.astype(x_ref.dtype)   # native-dtype MXU passes for bf16 I/O
    out_w = out_w.astype(x_ref.dtype)

    # ---- Expand gates to (Cout, chunk) on the MXU and apply to x, chunked
    # over the lane (H*W) axis so only one chunk of f32 results is live at a
    # time. Chunk starts are static multiples of 128 -> dense aligned stores.
    # TODO(synk): for very large H*W, a dynamic pl.loop over chunks (and the
    # two-pass pooling/apply split for v7x's 64 MiB VMEM with a "parallel"
    # tile axis for N == 1) would avoid unrolled code growth; not needed at
    # these sizes.
    def apply_chunk(start, size):
        gate = (jnp.dot(out_h, eh_ref[:, start:start + size],
                        preferred_element_type=jnp.float32) *
                jnp.dot(out_w, ew_ref[:, start:start + size],
                        preferred_element_type=jnp.float32))         # (Cout, size)
        xs = x_ref[:, start:start + size]
        o_ref[:, start:start + size] = (xs * gate.astype(xs.dtype)).astype(o_ref.dtype)

    for start in range(0, HW, _EXPAND_CHUNK):
        apply_chunk(start, min(_EXPAND_CHUNK, HW - start))


def _constant_operands(H, W, x_dtype):
    """0/1 selection+expansion matrices and the per-column mean scale row."""
    mask_dtype = jnp.bfloat16 if x_dtype == jnp.bfloat16 else jnp.float32
    # eh[h, h*W + w] = 1 ; ew[w, h*W + w] = 1  (exact 0/1 entries in any dtype)
    eh = np.kron(np.eye(H, dtype=np.float32), np.ones((1, W), np.float32))   # (H, H*W)
    ew = np.kron(np.ones((1, H), np.float32), np.eye(W, dtype=np.float32))   # (W, H*W)
    pool = np.concatenate([eh.T, ew.T], axis=1)                              # (H*W, H+W)
    scale = np.concatenate([np.full((1, H), 1.0 / W, np.float32),
                            np.full((1, W), 1.0 / H, np.float32)], axis=1)   # (1, H+W)
    return (jnp.asarray(pool, dtype=mask_dtype),
            jnp.asarray(scale, dtype=jnp.float32),
            jnp.asarray(eh, dtype=mask_dtype),
            jnp.asarray(ew, dtype=mask_dtype))


def prepare_params(params):
    """Fold BatchNorm (eval mode) into conv1; keep conv2/conv3 separate."""
    w1, b1, bn_scale, bn_bias, w2, b2, w3, b3 = params
    w1f = bn_scale * w1                        # (temp_c, Cin)
    b1f = bn_scale * b1 + bn_bias              # (temp_c, 1)
    return w1f, b1f, w2, b2, w3, b3


def _physical_vmem_bytes():
    """Per-core VMEM capacity of the current TPU generation (with fallback)."""
    try:
        return int(pltpu.get_tpu_info().vmem_capacity_bytes)
    except Exception:
        return 64 << 20     # conservative (v7x-sized) assumption if unknown


def coord_attention(x, params):
    N, C, H, W = x.shape
    w1f, b1f, w2, b2, w3, b3 = prepare_params(params)
    assert w2.shape[0] == C and w3.shape[0] == C, (
        "CoordAttention's `short * out_w * out_h` broadcast requires "
        "out_channels == in_channels")

    HW = H * W
    x2d = x.reshape(N, C, HW)                  # free, contiguous HBM reshape
    pool, scale, eh, ew = _constant_operands(H, W, x.dtype)
    consts = (pool, scale, eh, ew, w1f, b1f, w2, b2, w3, b3)

    # ---- VMEM budget: double-buffered x/o slabs + constants + in-kernel
    # temporaries, capped below the physical per-core VMEM of this generation.
    itemsize = x.dtype.itemsize
    slab = C * HW * itemsize
    const_bytes = sum(int(a.size) * a.dtype.itemsize for a in consts)
    chunk = min(HW, _EXPAND_CHUNK)
    kernel_temps = ((3 * 4 + itemsize) * C * chunk           # expansion dots + gate + x chunk
                    + (H + W) * chunk * eh.dtype.itemsize    # eh/ew chunk operands
                    + 8 * C * (H + W) * 4                    # pooled sums / MLP temps
                    + slab)                                   # slack for the pooling operand
    phys = _physical_vmem_bytes()
    cap = phys - max(12 << 20, phys // 8)      # leave Mosaic-internal headroom
    # TODO(synk): if 2*(2*slab) + constants exceed `cap` (huge C*H*W on v7x's
    # 64 MiB VMEM), switch to a two-pass pooling/apply split with a "parallel"
    # tile axis so it fits and both v7x TensorCores get work even at N == 1.

    def run(const_buffers):
        budget = (2 * (2 * slab) + const_buffers * const_bytes
                  + kernel_temps + (4 << 20))
        vmem_limit = int(min(max(budget, 32 << 20), cap))

        def const_spec(arr):
            nd = arr.ndim
            idx = lambda n, _nd=nd: (0,) * _nd
            if const_buffers == 1:
                # Grid-invariant operand: a second pipeline buffer is pure waste.
                return pl.BlockSpec(arr.shape, idx, pipeline_mode=pl.Buffered(1))
            return pl.BlockSpec(arr.shape, idx)

        return pl.pallas_call(
            coord_attention_kernel,
            out_shape=jax.ShapeDtypeStruct((N, C, HW), x.dtype),
            grid=(N,),
            in_specs=[pl.BlockSpec((None, C, HW), lambda n: (n, 0, 0))]
                     + [const_spec(a) for a in consts],
            out_specs=pl.BlockSpec((None, C, HW), lambda n: (n, 0, 0)),
            compiler_params=pltpu.CompilerParams(
                dimension_semantics=("parallel",),
                vmem_limit_bytes=vmem_limit),
        )(x2d, *consts)

    try:
        out2d = run(const_buffers=1)   # single-buffer the never-changing operands
    except Exception:                  # pl.Buffered(1) unsupported -> default buffering
        out2d = run(const_buffers=2)
    return out2d.reshape(N, C, H, W)


def init_params(key, in_channels, out_channels, reduction=32, eps=1e-5):
    temp_c = max(8, in_channels // reduction)
    ks = jax.random.split(key, 8)
    w1 = 0.1 * jax.random.normal(ks[0], (temp_c, in_channels), jnp.float32)
    b1 = 0.1 * jax.random.normal(ks[1], (temp_c, 1), jnp.float32)
    gamma = 1.0 + 0.1 * jax.random.normal(ks[2], (temp_c, 1), jnp.float32)
    beta = 0.1 * jax.random.normal(ks[3], (temp_c, 1), jnp.float32)
    running_mean = 0.1 * jax.random.normal(ks[4], (temp_c, 1), jnp.float32)
    running_var = jnp.abs(jax.random.normal(ks[5], (temp_c, 1), jnp.float32)) + 0.5
    bn_scale = gamma / jnp.sqrt(running_var + eps)   # BN folded (eval mode)
    bn_bias = beta - running_mean * bn_scale
    w2 = 0.1 * jax.random.normal(ks[6], (out_channels, temp_c), jnp.float32)
    b2 = jnp.zeros((out_channels, 1), jnp.float32)
    w3 = 0.1 * jax.random.normal(ks[7], (out_channels, temp_c), jnp.float32)
    b3 = jnp.zeros((out_channels, 1), jnp.float32)
    return (w1, b1, bn_scale, bn_bias, w2, b2, w3, b3)


def coord_attention_ref(x, params):
    """Pure-JAX reference mirroring the PyTorch forward (for validation)."""
    w1, b1, bn_scale, bn_bias, w2, b2, w3, b3 = params
    N, C, H, W = x.shape
    hp = jax.lax.Precision.HIGHEST
    x_h = jnp.mean(x, axis=3)                         # (N, C, H)
    x_w = jnp.mean(x, axis=2)                         # (N, C, W)
    x_cat = jnp.concatenate([x_h, x_w], axis=2)       # (N, C, H+W)
    y = jnp.einsum('oc,nck->nok', w1, x_cat, precision=hp) + b1[None]
    y = y * bn_scale[None] + bn_bias[None]
    y = y * jnp.clip(y + 3.0, 0.0, 6.0) / 6.0
    th = jnp.where(y > 0.1, y, 0.0)
    y = th + th                                       # inplace ThresholdedReLU aliasing
    y_h, y_w = y[:, :, :H], y[:, :, H:]
    out_h = jax.nn.sigmoid(jnp.einsum('oc,nck->nok', w2, y_h, precision=hp) + b2[None])
    out_w = jax.nn.sigmoid(jnp.einsum('oc,nck->nok', w3, y_w, precision=hp) + b3[None])
    return x * out_w[:, :, None, :] * out_h[:, :, :, None]


if __name__ == "__main__":
    key = jax.random.PRNGKey(0)
    k1, k2, k3, k4 = jax.random.split(key, 4)

    # Case 1: small f32 (single expansion chunk).
    N, C, H, W = 2, 4, 16, 16
    x = jax.random.normal(k1, (N, C, H, W), jnp.float32)
    params = init_params(k2, C, C)    # out_channels == in_channels (required by module)
    out = jax.block_until_ready(coord_attention(x, params))
    ref = coord_attention_ref(x, params)
    assert out.shape == (N, C, H, W)
    assert jnp.allclose(out, ref, atol=5e-3, rtol=5e-3), "f32 mismatch vs reference"

    # Case 2: bf16 I/O with H*W > _EXPAND_CHUNK so the chunked gate-expansion /
    # apply loop (including the remainder chunk) and the bf16 path are exercised.
    N2, C2, H2, W2 = 1, 8, 64, 72
    xf = jax.random.normal(k3, (N2, C2, H2, W2), jnp.float32)
    params2 = init_params(k4, C2, C2)
    x_bf16 = xf.astype(jnp.bfloat16)
    out2 = jax.block_until_ready(coord_attention(x_bf16, params2))
    ref2 = coord_attention_ref(x_bf16.astype(jnp.float32), params2)
    assert out2.dtype == jnp.bfloat16
    assert jnp.allclose(out2.astype(jnp.float32), ref2, atol=2e-2, rtol=2e-2), \
        "bf16 mismatch vs reference"

    print("KERNEL_OK")
</pallas_src>

<mosaic_0001>
module attributes {stable_mosaic.version = 11 : i64} {
  func.func @coord_attention_kernel(%arg0: i32, %arg1: memref<1x4x256xf32, #tpu.memory_space<vmem>>, %arg2: memref<256x32xf32, #tpu.memory_space<vmem>>, %arg3: memref<1x32xf32, #tpu.memory_space<vmem>>, %arg4: memref<16x256xf32, #tpu.memory_space<vmem>>, %arg5: memref<16x256xf32, #tpu.memory_space<vmem>>, %arg6: memref<8x4xf32, #tpu.memory_space<vmem>>, %arg7: memref<8x1xf32, #tpu.memory_space<vmem>>, %arg8: memref<4x8xf32, #tpu.memory_space<vmem>>, %arg9: memref<4x1xf32, #tpu.memory_space<vmem>>, %arg10: memref<4x8xf32, #tpu.memory_space<vmem>>, %arg11: memref<4x1xf32, #tpu.memory_space<vmem>>, %arg12: memref<1x4x256xf32, #tpu.memory_space<vmem>>) attributes {dimension_semantics = [#tpu.dimension_semantics<parallel>], iteration_bounds = array<i64: 2>, scalar_prefetch = 0 : i64, scratch_operands = 0 : i64, tpu.core_type = #tpu.core_type<tc>, window_params = [{transform_indices = @transform_0, window_bounds = array<i64: 1, 4, 256>}, {pipeline_mode = #tpu.pipeline_mode<synchronous>, transform_indices = @transform_1, window_bounds = array<i64: 256, 32>}, {pipeline_mode = #tpu.pipeline_mode<synchronous>, transform_indices = @transform_2, window_bounds = array<i64: 1, 32>}, {pipeline_mode = #tpu.pipeline_mode<synchronous>, transform_indices = @transform_3, window_bounds = array<i64: 16, 256>}, {pipeline_mode = #tpu.pipeline_mode<synchronous>, transform_indices = @transform_4, window_bounds = array<i64: 16, 256>}, {pipeline_mode = #tpu.pipeline_mode<synchronous>, transform_indices = @transform_5, window_bounds = array<i64: 8, 4>}, {pipeline_mode = #tpu.pipeline_mode<synchronous>, transform_indices = @transform_6, window_bounds = array<i64: 8, 1>}, {pipeline_mode = #tpu.pipeline_mode<synchronous>, transform_indices = @transform_7, window_bounds = array<i64: 4, 8>}, {pipeline_mode = #tpu.pipeline_mode<synchronous>, transform_indices = @transform_8, window_bounds = array<i64: 4, 1>}, {pipeline_mode = #tpu.pipeline_mode<synchronous>, transform_indices = @transform_9, window_bounds = array<i64: 4, 8>}, {pipeline_mode = #tpu.pipeline_mode<synchronous>, transform_indices = @transform_10, window_bounds = array<i64: 4, 1>}, {transform_indices = @transform_11, window_bounds = array<i64: 1, 4, 256>}]} {
    %c0 = arith.constant 0 : index
    %c0_0 = arith.constant 0 : index
    %c0_1 = arith.constant 0 : index
    %0 = vector.load %arg1[%c0, %c0_0, %c0_1] : memref<1x4x256xf32, #tpu.memory_space<vmem>>, vector<1x4x256xf32>
    %1 = vector.shape_cast %0 : vector<1x4x256xf32> to vector<4x256xf32>
    %c0_2 = arith.constant 0 : index
    %c0_3 = arith.constant 0 : index
    %2 = vector.load %arg2[%c0_2, %c0_3] : memref<256x32xf32, #tpu.memory_space<vmem>>, vector<256x32xf32>
    %cst = arith.constant dense<0.000000e+00> : vector<4x32xf32>
    %3 = tpu.matmul %1, %2, %cst {dimension_numbers = #tpu.dot_dimension_numbers<[1], [0], [0], [1], [0, 0, 1, 1], [], []>} : vector<4x256xf32>, vector<256x32xf32>, vector<4x32xf32> -> vector<4x32xf32>
    %c0_4 = arith.constant 0 : index
    %c0_5 = arith.constant 0 : index
    %4 = vector.load %arg6[%c0_4, %c0_5] : memref<8x4xf32, #tpu.memory_space<vmem>>, vector<8x4xf32>
    %cst_6 = arith.constant dense<0.000000e+00> : vector<8x32xf32>
    %5 = tpu.matmul %4, %3, %cst_6 {dimension_numbers = #tpu.dot_dimension_numbers<[1], [0], [0], [1], [0, 0, 1, 1], [], []>} : vector<8x4xf32>, vector<4x32xf32>, vector<8x32xf32> -> vector<8x32xf32>
    %c0_7 = arith.constant 0 : index
    %c0_8 = arith.constant 0 : index
    %6 = vector.load %arg3[%c0_7, %c0_8] : memref<1x32xf32, #tpu.memory_space<vmem>>, vector<1x32xf32>
    %7 = vector.broadcast %6 : vector<1x32xf32> to vector<8x32xf32>
    %8 = arith.mulf %5, %7 : vector<8x32xf32>
    %c0_9 = arith.constant 0 : index
    %c0_10 = arith.constant 0 : index
    %9 = vector.load %arg7[%c0_9, %c0_10] : memref<8x1xf32, #tpu.memory_space<vmem>>, vector<8x1xf32>
    %10 = vector.broadcast %9 : vector<8x1xf32> to vector<8x32xf32>
    %11 = arith.addf %8, %10 : vector<8x32xf32>
    %cst_11 = arith.constant 3.000000e+00 : f32
    %12 = vector.broadcast %cst_11 : f32 to vector<8x32xf32>
    %13 = arith.addf %11, %12 : vector<8x32xf32>
    %cst_12 = arith.constant 0.000000e+00 : f32
    %cst_13 = arith.constant 6.000000e+00 : f32
    %14 = vector.broadcast %cst_12 : f32 to vector<8x32xf32>
    %15 = arith.maximumf %14, %13 : vector<8x32xf32>
    %16 = vector.broadcast %cst_13 : f32 to vector<8x32xf32>
    %17 = arith.minimumf %16, %15 : vector<8x32xf32>
    %18 = arith.mulf %11, %17 : vector<8x32xf32>
    %cst_14 = arith.constant 0.166666672 : f32
    %19 = vector.broadcast %cst_14 : f32 to vector<8x32xf32>
    %20 = arith.mulf %18, %19 : vector<8x32xf32>
    %cst_15 = arith.constant 1.000000e-01 : f32
    %21 = vector.broadcast %cst_15 : f32 to vector<8x32xf32>
    %22 = arith.cmpf ogt, %20, %21 : vector<8x32xf32>
    %cst_16 = arith.constant 0.000000e+00 : f32
    %23 = vector.broadcast %cst_16 : f32 to vector<8x32xf32>
    %24 = arith.select %22, %20, %23 : vector<8x32xi1>, vector<8x32xf32>
    %25 = arith.addf %24, %24 : vector<8x32xf32>
    %c0_17 = arith.constant 0 : index
    %c0_18 = arith.constant 0 : index
    %26 = vector.load %arg8[%c0_17, %c0_18] : memref<4x8xf32, #tpu.memory_space<vmem>>, vector<4x8xf32>
    %27 = vector.extract_strided_slice %25 {offsets = [0, 0], sizes = [8, 16], strides = [1, 1]} : vector<8x32xf32> to vector<8x16xf32>
    %cst_19 = arith.constant dense<0.000000e+00> : vector<4x16xf32>
    %28 = tpu.matmul %26, %27, %cst_19 {dimension_numbers = #tpu.dot_dimension_numbers<[1], [0], [0], [1], [0, 0, 1, 1], [], []>} : vector<4x8xf32>, vector<8x16xf32>, vector<4x16xf32> -> vector<4x16xf32>
    %c0_20 = arith.constant 0 : index
    %c0_21 = arith.constant 0 : index
    %29 = vector.load %arg9[%c0_20, %c0_21] : memref<4x1xf32, #tpu.memory_space<vmem>>, vector<4x1xf32>
    %30 = vector.broadcast %29 : vector<4x1xf32> to vector<4x16xf32>
    %31 = arith.addf %28, %30 : vector<4x16xf32>
    %32 = arith.negf %31 : vector<4x16xf32>
    %33 = math.exp %32 : vector<4x16xf32>
    %cst_22 = arith.constant 1.000000e+00 : f32
    %34 = vector.broadcast %cst_22 : f32 to vector<4x16xf32>
    %35 = arith.addf %34, %33 : vector<4x16xf32>
    %36 = arith.divf %34, %35 : vector<4x16xf32>
    %c0_23 = arith.constant 0 : index
    %c0_24 = arith.constant 0 : index
    %37 = vector.load %arg10[%c0_23, %c0_24] : memref<4x8xf32, #tpu.memory_space<vmem>>, vector<4x8xf32>
    %38 = vector.extract_strided_slice %25 {offsets = [0, 16], sizes = [8, 16], strides = [1, 1]} : vector<8x32xf32> to vector<8x16xf32>
    %cst_25 = arith.constant dense<0.000000e+00> : vector<4x16xf32>
    %39 = tpu.matmul %37, %38, %cst_25 {dimension_numbers = #tpu.dot_dimension_numbers<[1], [0], [0], [1], [0, 0, 1, 1], [], []>} : vector<4x8xf32>, vector<8x16xf32>, vector<4x16xf32> -> vector<4x16xf32>
    %c0_26 = arith.constant 0 : index
    %c0_27 = arith.constant 0 : index
    %40 = vector.load %arg11[%c0_26, %c0_27] : memref<4x1xf32, #tpu.memory_space<vmem>>, vector<4x1xf32>
    %41 = vector.broadcast %40 : vector<4x1xf32> to vector<4x16xf32>
    %42 = arith.addf %39, %41 : vector<4x16xf32>
    %43 = arith.negf %42 : vector<4x16xf32>
    %44 = math.exp %43 : vector<4x16xf32>
    %cst_28 = arith.constant 1.000000e+00 : f32
    %45 = vector.broadcast %cst_28 : f32 to vector<4x16xf32>
    %46 = arith.addf %45, %44 : vector<4x16xf32>
    %47 = arith.divf %45, %46 : vector<4x16xf32>
    %c0_29 = arith.constant 0 : index
    %c0_30 = arith.constant 0 : index
    %48 = vector.load %arg4[%c0_29, %c0_30] : memref<16x256xf32, #tpu.memory_space<vmem>>, vector<16x256xf32>
    %cst_31 = arith.constant dense<0.000000e+00> : vector<4x256xf32>
    %49 = tpu.matmul %36, %48, %cst_31 {dimension_numbers = #tpu.dot_dimension_numbers<[1], [0], [0], [1], [0, 0, 1, 1], [], []>} : vector<4x16xf32>, vector<16x256xf32>, vector<4x256xf32> -> vector<4x256xf32>
    %c0_32 = arith.constant 0 : index
    %c0_33 = arith.constant 0 : index
    %50 = vector.load %arg5[%c0_32, %c0_33] : memref<16x256xf32, #tpu.memory_space<vmem>>, vector<16x256xf32>
    %cst_34 = arith.constant dense<0.000000e+00> : vector<4x256xf32>
    %51 = tpu.matmul %47, %50, %cst_34 {dimension_numbers = #tpu.dot_dimension_numbers<[1], [0], [0], [1], [0, 0, 1, 1], [], []>} : vector<4x16xf32>, vector<16x256xf32>, vector<4x256xf32> -> vector<4x256xf32>
    %52 = arith.mulf %49, %51 : vector<4x256xf32>
    %c0_35 = arith.constant 0 : index
    %c0_36 = arith.constant 0 : index
    %c0_37 = arith.constant 0 : index
    %53 = vector.load %arg1[%c0_35, %c0_36, %c0_37] : memref<1x4x256xf32, #tpu.memory_space<vmem>>, vector<1x4x256xf32>
    %54 = vector.shape_cast %53 : vector<1x4x256xf32> to vector<4x256xf32>
    %55 = arith.mulf %54, %52 : vector<4x256xf32>
    %c0_38 = arith.constant 0 : index
    %c0_39 = arith.constant 0 : index
    %c0_40 = arith.constant 0 : index
    %56 = vector.load %arg12[%c0_38, %c0_39, %c0_40] : memref<1x4x256xf32, #tpu.memory_space<vmem>>, vector<1x4x256xf32>
    %57 = vector.shape_cast %56 : vector<1x4x256xf32> to vector<4x256xf32>
    %58 = vector.shape_cast %55 : vector<4x256xf32> to vector<1x4x256xf32>
    tpu.vector_store %arg12[%c0_38, %c0_39, %c0_40], %58 {strides = array<i32>} : memref<1x4x256xf32, #tpu.memory_space<vmem>>, vector<1x4x256xf32>,
    return
  }
  func.func @transform_0(%arg0: i32) -> (i32, i32, i32) {
    %c0_i32 = arith.constant 0 : i32
    %c0_i32_0 = arith.constant 0 : i32
    %c0_i32_1 = arith.constant 0 : i32
    return %arg0, %c0_i32, %c0_i32_0 : i32, i32, i32
  }
  func.func @transform_1(%arg0: i32) -> (i32, i32) {
    %c0_i32 = arith.constant 0 : i32
    %c0_i32_0 = arith.constant 0 : i32
    %c0_i32_1 = arith.constant 0 : i32
    return %c0_i32, %c0_i32_0 : i32, i32
  }
  func.func @transform_2(%arg0: i32) -> (i32, i32) {
    %c0_i32 = arith.constant 0 : i32
    %c0_i32_0 = arith.constant 0 : i32
    %c0_i32_1 = arith.constant 0 : i32
    return %c0_i32, %c0_i32_0 : i32, i32
  }
  func.func @transform_3(%arg0: i32) -> (i32, i32) {
    %c0_i32 = arith.constant 0 : i32
    %c0_i32_0 = arith.constant 0 : i32
    %c0_i32_1 = arith.constant 0 : i32
    return %c0_i32, %c0_i32_0 : i32, i32
  }
  func.func @transform_4(%arg0: i32) -> (i32, i32) {
    %c0_i32 = arith.constant 0 : i32
    %c0_i32_0 = arith.constant 0 : i32
    %c0_i32_1 = arith.constant 0 : i32
    return %c0_i32, %c0_i32_0 : i32, i32
  }
  func.func @transform_5(%arg0: i32) -> (i32, i32) {
    %c0_i32 = arith.constant 0 : i32
    %c0_i32_0 = arith.constant 0 : i32
    %c0_i32_1 = arith.constant 0 : i32
    return %c0_i32, %c0_i32_0 : i32, i32
  }
  func.func @transform_6(%arg0: i32) -> (i32, i32) {
    %c0_i32 = arith.constant 0 : i32
    %c0_i32_0 = arith.constant 0 : i32
    %c0_i32_1 = arith.constant 0 : i32
    return %c0_i32, %c0_i32_0 : i32, i32
  }
  func.func @transform_7(%arg0: i32) -> (i32, i32) {
    %c0_i32 = arith.constant 0 : i32
    %c0_i32_0 = arith.constant 0 : i32
    %c0_i32_1 = arith.constant 0 : i32
    return %c0_i32, %c0_i32_0 : i32, i32
  }
  func.func @transform_8(%arg0: i32) -> (i32, i32) {
    %c0_i32 = arith.constant 0 : i32
    %c0_i32_0 = arith.constant 0 : i32
    %c0_i32_1 = arith.constant 0 : i32
    return %c0_i32, %c0_i32_0 : i32, i32
  }
  func.func @transform_9(%arg0: i32) -> (i32, i32) {
    %c0_i32 = arith.constant 0 : i32
    %c0_i32_0 = arith.constant 0 : i32
    %c0_i32_1 = arith.constant 0 : i32
    return %c0_i32, %c0_i32_0 : i32, i32
  }
  func.func @transform_10(%arg0: i32) -> (i32, i32) {
    %c0_i32 = arith.constant 0 : i32
    %c0_i32_0 = arith.constant 0 : i32
    %c0_i32_1 = arith.constant 0 : i32
    return %c0_i32, %c0_i32_0 : i32, i32
  }
  func.func @transform_11(%arg0: i32) -> (i32, i32, i32) {
    %c0_i32 = arith.constant 0 : i32
    %c0_i32_0 = arith.constant 0 : i32
    %c0_i32_1 = arith.constant 0 : i32
    return %arg0, %c0_i32, %c0_i32_0 : i32, i32, i32
  }
}

module attributes {stable_mosaic.version = 11 : i64} {
  func.func @coord_attention_kernel(%arg0: i32, %arg1: memref<1x4x256xf32, #tpu.memory_space<vmem>>, %arg2: memref<256x32xf32, #tpu.memory_space<vmem>>, %arg3: memref<1x32xf32, #tpu.memory_space<vmem>>, %arg4: memref<16x256xf32, #tpu.memory_space<vmem>>, %arg5: memref<16x256xf32, #tpu.memory_space<vmem>>, %arg6: memref<8x4xf32, #tpu.memory_space<vmem>>, %arg7: memref<8x1xf32, #tpu.memory_space<vmem>>, %arg8: memref<4x8xf32, #tpu.memory_space<vmem>>, %arg9: memref<4x1xf32, #tpu.memory_space<vmem>>, %arg10: memref<4x8xf32, #tpu.memory_space<vmem>>, %arg11: memref<4x1xf32, #tpu.memory_space<vmem>>, %arg12: memref<1x4x256xf32, #tpu.memory_space<vmem>>) attributes {dimension_semantics = [#tpu.dimension_semantics<parallel>], iteration_bounds = array<i64: 2>, scalar_prefetch = 0 : i64, scratch_operands = 0 : i64, tpu.core_type = #tpu.core_type<tc>, window_params = [{transform_indices = @transform_0, window_bounds = array<i64: 1, 4, 256>}, {pipeline_mode = #tpu.pipeline_mode<synchronous>, transform_indices = @transform_1, window_bounds = array<i64: 256, 32>}, {pipeline_mode = #tpu.pipeline_mode<synchronous>, transform_indices = @transform_2, window_bounds = array<i64: 1, 32>}, {pipeline_mode = #tpu.pipeline_mode<synchronous>, transform_indices = @transform_3, window_bounds = array<i64: 16, 256>}, {pipeline_mode = #tpu.pipeline_mode<synchronous>, transform_indices = @transform_4, window_bounds = array<i64: 16, 256>}, {pipeline_mode = #tpu.pipeline_mode<synchronous>, transform_indices = @transform_5, window_bounds = array<i64: 8, 4>}, {pipeline_mode = #tpu.pipeline_mode<synchronous>, transform_indices = @transform_6, window_bounds = array<i64: 8, 1>}, {pipeline_mode = #tpu.pipeline_mode<synchronous>, transform_indices = @transform_7, window_bounds = array<i64: 4, 8>}, {pipeline_mode = #tpu.pipeline_mode<synchronous>, transform_indices = @transform_8, window_bounds = array<i64: 4, 1>}, {pipeline_mode = #tpu.pipeline_mode<synchronous>, transform_indices = @transform_9, window_bounds = array<i64: 4, 8>}, {pipeline_mode = #tpu.pipeline_mode<synchronous>, transform_indices = @transform_10, window_bounds = array<i64: 4, 1>}, {transform_indices = @transform_11, window_bounds = array<i64: 1, 4, 256>}]} {
    %c0 = arith.constant 0 : index
    %c0_0 = arith.constant 0 : index
    %c0_1 = arith.constant 0 : index
    %0 = vector.load %arg1[%c0, %c0_0, %c0_1] : memref<1x4x256xf32, #tpu.memory_space<vmem>>, vector<1x4x256xf32>
    %1 = vector.shape_cast %0 : vector<1x4x256xf32> to vector<4x256xf32>
    %c0_2 = arith.constant 0 : index
    %c0_3 = arith.constant 0 : index
    %2 = vector.load %arg2[%c0_2, %c0_3] : memref<256x32xf32, #tpu.memory_space<vmem>>, vector<256x32xf32>
    %cst = arith.constant dense<0.000000e+00> : vector<4x32xf32>
    %3 = tpu.matmul %1, %2, %cst {dimension_numbers = #tpu.dot_dimension_numbers<[1], [0], [0], [1], [0, 0, 1, 1], [], []>} : vector<4x256xf32>, vector<256x32xf32>, vector<4x32xf32> -> vector<4x32xf32>
    %c0_4 = arith.constant 0 : index
    %c0_5 = arith.constant 0 : index
    %4 = vector.load %arg6[%c0_4, %c0_5] : memref<8x4xf32, #tpu.memory_space<vmem>>, vector<8x4xf32>
    %cst_6 = arith.constant dense<0.000000e+00> : vector<8x32xf32>
    %5 = tpu.matmul %4, %3, %cst_6 {dimension_numbers = #tpu.dot_dimension_numbers<[1], [0], [0], [1], [0, 0, 1, 1], [], []>} : vector<8x4xf32>, vector<4x32xf32>, vector<8x32xf32> -> vector<8x32xf32>
    %c0_7 = arith.constant 0 : index
    %c0_8 = arith.constant 0 : index
    %6 = vector.load %arg3[%c0_7, %c0_8] : memref<1x32xf32, #tpu.memory_space<vmem>>, vector<1x32xf32>
    %7 = vector.broadcast %6 : vector<1x32xf32> to vector<8x32xf32>
    %8 = arith.mulf %5, %7 : vector<8x32xf32>
    %c0_9 = arith.constant 0 : index
    %c0_10 = arith.constant 0 : index
    %9 = vector.load %arg7[%c0_9, %c0_10] : memref<8x1xf32, #tpu.memory_space<vmem>>, vector<8x1xf32>
    %10 = vector.broadcast %9 : vector<8x1xf32> to vector<8x32xf32>
    %11 = arith.addf %8, %10 : vector<8x32xf32>
    %cst_11 = arith.constant 3.000000e+00 : f32
    %12 = vector.broadcast %cst_11 : f32 to vector<8x32xf32>
    %13 = arith.addf %11, %12 : vector<8x32xf32>
    %cst_12 = arith.constant 0.000000e+00 : f32
    %cst_13 = arith.constant 6.000000e+00 : f32
    %14 = vector.broadcast %cst_12 : f32 to vector<8x32xf32>
    %15 = arith.maximumf %14, %13 : vector<8x32xf32>
    %16 = vector.broadcast %cst_13 : f32 to vector<8x32xf32>
    %17 = arith.minimumf %16, %15 : vector<8x32xf32>
    %18 = arith.mulf %11, %17 : vector<8x32xf32>
    %cst_14 = arith.constant 0.166666672 : f32
    %19 = vector.broadcast %cst_14 : f32 to vector<8x32xf32>
    %20 = arith.mulf %18, %19 : vector<8x32xf32>
    %cst_15 = arith.constant 1.000000e-01 : f32
    %21 = vector.broadcast %cst_15 : f32 to vector<8x32xf32>
    %22 = arith.cmpf ogt, %20, %21 : vector<8x32xf32>
    %cst_16 = arith.constant 0.000000e+00 : f32
    %23 = vector.broadcast %cst_16 : f32 to vector<8x32xf32>
    %24 = arith.select %22, %20, %23 : vector<8x32xi1>, vector<8x32xf32>
    %25 = arith.addf %24, %24 : vector<8x32xf32>
    %c0_17 = arith.constant 0 : index
    %c0_18 = arith.constant 0 : index
    %26 = vector.load %arg8[%c0_17, %c0_18] : memref<4x8xf32, #tpu.memory_space<vmem>>, vector<4x8xf32>
    %27 = vector.extract_strided_slice %25 {offsets = [0, 0], sizes = [8, 16], strides = [1, 1]} : vector<8x32xf32> to vector<8x16xf32>
    %cst_19 = arith.constant dense<0.000000e+00> : vector<4x16xf32>
    %28 = tpu.matmul %26, %27, %cst_19 {dimension_numbers = #tpu.dot_dimension_numbers<[1], [0], [0], [1], [0, 0, 1, 1], [], []>} : vector<4x8xf32>, vector<8x16xf32>, vector<4x16xf32> -> vector<4x16xf32>
    %c0_20 = arith.constant 0 : index
    %c0_21 = arith.constant 0 : index
    %29 = vector.load %arg9[%c0_20, %c0_21] : memref<4x1xf32, #tpu.memory_space<vmem>>, vector<4x1xf32>
    %30 = vector.broadcast %29 : vector<4x1xf32> to vector<4x16xf32>
    %31 = arith.addf %28, %30 : vector<4x16xf32>
    %32 = arith.negf %31 : vector<4x16xf32>
    %33 = math.exp %32 : vector<4x16xf32>
    %cst_22 = arith.constant 1.000000e+00 : f32
    %34 = vector.broadcast %cst_22 : f32 to vector<4x16xf32>
    %35 = arith.addf %34, %33 : vector<4x16xf32>
    %36 = arith.divf %34, %35 : vector<4x16xf32>
    %c0_23 = arith.constant 0 : index
    %c0_24 = arith.constant 0 : index
    %37 = vector.load %arg10[%c0_23, %c0_24] : memref<4x8xf32, #tpu.memory_space<vmem>>, vector<4x8xf32>
    %38 = vector.extract_strided_slice %25 {offsets = [0, 16], sizes = [8, 16], strides = [1, 1]} : vector<8x32xf32> to vector<8x16xf32>
    %cst_25 = arith.constant dense<0.000000e+00> : vector<4x16xf32>
    %39 = tpu.matmul %37, %38, %cst_25 {dimension_numbers = #tpu.dot_dimension_numbers<[1], [0], [0], [1], [0, 0, 1, 1], [], []>} : vector<4x8xf32>, vector<8x16xf32>, vector<4x16xf32> -> vector<4x16xf32>
    %c0_26 = arith.constant 0 : index
    %c0_27 = arith.constant 0 : index
    %40 = vector.load %arg11[%c0_26, %c0_27] : memref<4x1xf32, #tpu.memory_space<vmem>>, vector<4x1xf32>
    %41 = vector.broadcast %40 : vector<4x1xf32> to vector<4x16xf32>
    %42 = arith.addf %39, %41 : vector<4x16xf32>
    %43 = arith.negf %42 : vector<4x16xf32>
    %44 = math.exp %43 : vector<4x16xf32>
    %cst_28 = arith.constant 1.000000e+00 : f32
    %45 = vector.broadcast %cst_28 : f32 to vector<4x16xf32>
    %46 = arith.addf %45, %44 : vector<4x16xf32>
    %47 = arith.divf %45, %46 : vector<4x16xf32>
    %c0_29 = arith.constant 0 : index
    %c0_30 = arith.constant 0 : index
    %48 = vector.load %arg4[%c0_29, %c0_30] : memref<16x256xf32, #tpu.memory_space<vmem>>, vector<16x256xf32>
    %cst_31 = arith.constant dense<0.000000e+00> : vector<4x256xf32>
    %49 = tpu.matmul %36, %48, %cst_31 {dimension_numbers = #tpu.dot_dimension_numbers<[1], [0], [0], [1], [0, 0, 1, 1], [], []>} : vector<4x16xf32>, vector<16x256xf32>, vector<4x256xf32> -> vector<4x256xf32>
    %c0_32 = arith.constant 0 : index
    %c0_33 = arith.constant 0 : index
    %50 = vector.load %arg5[%c0_32, %c0_33] : memref<16x256xf32, #tpu.memory_space<vmem>>, vector<16x256xf32>
    %cst_34 = arith.constant dense<0.000000e+00> : vector<4x256xf32>
    %51 = tpu.matmul %47, %50, %cst_34 {dimension_numbers = #tpu.dot_dimension_numbers<[1], [0], [0], [1], [0, 0, 1, 1], [], []>} : vector<4x16xf32>, vector<16x256xf32>, vector<4x256xf32> -> vector<4x256xf32>
    %52 = arith.mulf %49, %51 : vector<4x256xf32>
    %c0_35 = arith.constant 0 : index
    %c0_36 = arith.constant 0 : index
    %c0_37 = arith.constant 0 : index
    %53 = vector.load %arg1[%c0_35, %c0_36, %c0_37] : memref<1x4x256xf32, #tpu.memory_space<vmem>>, vector<1x4x256xf32>
    %54 = vector.shape_cast %53 : vector<1x4x256xf32> to vector<4x256xf32>
    %55 = arith.mulf %54, %52 : vector<4x256xf32>
    %c0_38 = arith.constant 0 : index
    %c0_39 = arith.constant 0 : index
    %c0_40 = arith.constant 0 : index
    %56 = vector.load %arg12[%c0_38, %c0_39, %c0_40] : memref<1x4x256xf32, #tpu.memory_space<vmem>>, vector<1x4x256xf32>
    %57 = vector.shape_cast %56 : vector<1x4x256xf32> to vector<4x256xf32>
    %58 = vector.shape_cast %55 : vector<4x256xf32> to vector<1x4x256xf32>
    tpu.vector_store %arg12[%c0_38, %c0_39, %c0_40], %58 {strides = array<i32>} : memref<1x4x256xf32, #tpu.memory_space<vmem>>, vector<1x4x256xf32>,
    return
  }
  func.func @transform_0(%arg0: i32) -> (i32, i32, i32) {
    %c0_i32 = arith.constant 0 : i32
    %c0_i32_0 = arith.constant 0 : i32
    %c0_i32_1 = arith.constant 0 : i32
    return %arg0, %c0_i32, %c0_i32_0 : i32, i32, i32
  }
  func.func @transform_1(%arg0: i32) -> (i32, i32) {
    %c0_i32 = arith.constant 0 : i32
    %c0_i32_0 = arith.constant 0 : i32
    %c0_i32_1 = arith.constant 0 : i32
    return %c0_i32, %c0_i32_0 : i32, i32
  }
  func.func @transform_2(%arg0: i32) -> (i32, i32) {
    %c0_i32 = arith.constant 0 : i32
    %c0_i32_0 = arith.constant 0 : i32
    %c0_i32_1 = arith.constant 0 : i32
    return %c0_i32, %c0_i32_0 : i32, i32
  }
  func.func @transform_3(%arg0: i32) -> (i32, i32) {
    %c0_i32 = arith.constant 0 : i32
    %c0_i32_0 = arith.constant 0 : i32
    %c0_i32_1 = arith.constant 0 : i32
    return %c0_i32, %c0_i32_0 : i32, i32
  }
  func.func @transform_4(%arg0: i32) -> (i32, i32) {
    %c0_i32 = arith.constant 0 : i32
    %c0_i32_0 = arith.constant 0 : i32
    %c0_i32_1 = arith.constant 0 : i32
    return %c0_i32, %c0_i32_0 : i32, i32
  }
  func.func @transform_5(%arg0: i32) -> (i32, i32) {
    %c0_i32 = arith.constant 0 : i32
    %c0_i32_0 = arith.constant 0 : i32
    %c0_i32_1 = arith.constant 0 : i32
    return %c0_i32, %c0_i32_0 : i32, i32
  }
  func.func @transform_6(%arg0: i32) -> (i32, i32) {
    %c0_i32 = arith.constant 0 : i32
    %c0_i32_0 = arith.constant 0 : i32
    %c0_i32_1 = arith.constant 0 : i32
    return %c0_i32, %c0_i32_0 : i32, i32
  }
  func.func @transform_7(%arg0: i32) -> (i32, i32) {
    %c0_i32 = arith.constant 0 : i32
    %c0_i32_0 = arith.constant 0 : i32
    %c0_i32_1 = arith.constant 0 : i32
    return %c0_i32, %c0_i32_0 : i32, i32
  }
  func.func @transform_8(%arg0: i32) -> (i32, i32) {
    %c0_i32 = arith.constant 0 : i32
    %c0_i32_0 = arith.constant 0 : i32
    %c0_i32_1 = arith.constant 0 : i32
    return %c0_i32, %c0_i32_0 : i32, i32
  }
  func.func @transform_9(%arg0: i32) -> (i32, i32) {
    %c0_i32 = arith.constant 0 : i32
    %c0_i32_0 = arith.constant 0 : i32
    %c0_i32_1 = arith.constant 0 : i32
    return %c0_i32, %c0_i32_0 : i32, i32
  }
  func.func @transform_10(%arg0: i32) -> (i32, i32) {
    %c0_i32 = arith.constant 0 : i32
    %c0_i32_0 = arith.constant 0 : i32
    %c0_i32_1 = arith.constant 0 : i32
    return %c0_i32, %c0_i32_0 : i32, i32
  }
  func.func @transform_11(%arg0: i32) -> (i32, i32, i32) {
    %c0_i32 = arith.constant 0 : i32
    %c0_i32_0 = arith.constant 0 : i32
    %c0_i32_1 = arith.constant 0 : i32
    return %arg0, %c0_i32, %c0_i32_0 : i32, i32, i32
  }
}

</mosaic_0001>

<llo_original>
// kernel: tpu_custom_call.1
$region0: #{tpu_custom_call.1}
  #allocation0 [shape = 'u32[]', space=smem, size = 0x4, offset = 0x4, fixed_abs, tag = 'smem constant byte address 0x4 - core index']
  #allocation1 [shape = 'u32[144,128]{1,0:T(1,128)}', space=vmem, size = 0x12000, scoped, tag = 'internal scratch']
  %s0 = inlined_call_operand.vmem [shape: f32[2,4,256], index: 0, kind: input, shape index: {}]
  %s1 = inlined_call_operand.vmem [shape: f32[256,32], index: 1, kind: input, shape index: {}]
  %s2 = inlined_call_operand.vmem [shape: f32[1,32], index: 2, kind: input, shape index: {}]
  %s3 = inlined_call_operand.vmem [shape: f32[16,256], index: 3, kind: input, shape index: {}]
  %s4 = inlined_call_operand.vmem [shape: f32[16,256], index: 4, kind: input, shape index: {}]
  %s5 = inlined_call_operand.vmem [shape: f32[8,4], index: 5, kind: input, shape index: {}]
  %s6 = inlined_call_operand.vmem [shape: f32[8,1], index: 6, kind: input, shape index: {}]
  %s7 = inlined_call_operand.vmem [shape: f32[4,8], index: 7, kind: input, shape index: {}]
  %s8 = inlined_call_operand.vmem [shape: f32[4,1], index: 8, kind: input, shape index: {}]
  %s9 = inlined_call_operand.vmem [shape: f32[4,8], index: 9, kind: input, shape index: {}]
  %s10 = inlined_call_operand.vmem [shape: f32[4,1], index: 10, kind: input, shape index: {}]
  %s11 = inlined_call_operand.hbm [shape: f32[2,4,256], index: 11, kind: output, shape index: {}]
  %s12 = sld [smem:[#allocation0]]
  $region77: #{tpu_custom_call.1} parent=0
    _
  %s14 = ssub.s32 1, %s12
  %s15 = scalar_select 0, %s14, %s12
  $region1: #{tpu_custom_call.1} parent=0
    #allocation2 [shape = 'u8[8192]{0}', space=vmem, size = 0x2000, scoped, tag = 'output window, operand 0']
    #allocation3 [shape = 's32[2]{0}', space=sflag, size = 0x8, scoped, tag = 'scoped memory for tpu_custom_call.1']
    %16 = vsyncpa [#allocation3], 0
    %s17 = scalar_lea.sflag [#allocation3], 1
    %18 = vsyncpa %s17, 0
    loop: start=0, step=1, limit=4
    $region2: #{tpu_custom_call.1} parent=1 // loop_pre_header
      _
    $region3: #{tpu_custom_call.1} parent=1 // loop_header
      %s20 = sphi 0, %s24
      %p21 = scmp.ge.s32.totalorder %s20, 4
      %s30 = sphi 0, %s32
      %s33 = sphi 0, %s30
      %s34 = sphi 0, %s33
      %s50 = sphi 0, %s34
      %s54 = sphi 0, %s54
      %s56 = sphi 0, %s54
      %s57 = sphi 0, %s56
      %s71 = sphi 0, %s57
      %s75 = sphi 0, %s75
      %s77 = sphi 0, %s75
      %s78 = sphi 0, %s77
      %s92 = sphi 0, %s78
      %s96 = sphi 0, %s96
      %s98 = sphi 0, %s96
      %s99 = sphi 0, %s98
      %s113 = sphi 0, %s99
      %s117 = sphi 0, %s117
      %s119 = sphi 0, %s117
      %s120 = sphi 0, %s119
      %s134 = sphi 0, %s120
      %s138 = sphi 0, %s138
      %s140 = sphi 0, %s138
      %s141 = sphi 0, %s140
      %s155 = sphi 0, %s141
      %s159 = sphi 0, %s159
      %s161 = sphi 0, %s159
      %s162 = sphi 0, %s161
      %s176 = sphi 0, %s162
      %s180 = sphi 0, %s180
      %s182 = sphi 0, %s180
      %s183 = sphi 0, %s182
      %s197 = sphi 0, %s183
      %s201 = sphi 0, %s201
      %s203 = sphi 0, %s201
      %s204 = sphi 0, %s203
      %s218 = sphi 0, %s204
      %s222 = sphi 0, %s222
      %s224 = sphi 0, %s222
      %s225 = sphi 0, %s224
      %s239 = sphi 0, %s225
      %s243 = sphi 0, %s243
      %s245 = sphi 0, %s243
      %s246 = sphi 0, %s245
      %s260 = sphi 0, %s246
      %s266 = sphi 0, %s268
      %s269 = sphi 0, %s266
      %s270 = sphi 0, %s269
      %s286 = sphi 0, %s270
    $region4: #{tpu_custom_call.1} parent=1 // loop_header_branch
      %23 = sbr.rel (%p21) target = $region8
    $region5: #{tpu_custom_call.1} parent=1 // loop_body
      %s25 = ssub.s32 %s20, 1
      %s26 = ssub.s32 %s20, 2
      %s27 = sadd.s32 %s20, 1
      %s28 = ssub.s32 %s20, %s27
      %p29 = scmp.eq.s32.totalorder %s28, 0
      %s31 = sadd.s32 %s30, 1
      %s32 = scalar_select %p29, %s30, %s31
      %p35 = pneg %p29
      %p36 = scmp.eq.s32.totalorder %s20, 1
      %p37 = por %p35, %p36
      %p38 = scmp.ne.s32.totalorder %s30, %s33
      %p39 = scmp.eq.s32.totalorder %s20, 0
      %p40 = por %p38, %p39
      %p41 = scmp.ne.s32.totalorder %s30, %s33
      %p42 = scmp.eq.s32.totalorder %s25, 1
      %p43 = por %p41, %p42
      %p44 = scmp.ne.s32.totalorder %s33, %s34
      %p45 = scmp.eq.s32.totalorder %s25, 0
      %p46 = por %p44, %p45
      %p47 = scmp.ne.s32.totalorder %s33, %s34
      %p48 = scmp.eq.s32.totalorder %s26, 1
      %p49 = por %p47, %p48
      %p51 = scmp.ne.s32.totalorder %s34, %s50
      %p52 = scmp.eq.s32.totalorder %s26, 0
      %p53 = por %p51, %p52
      %s55 = sadd.s32 %s54, 1
      %p58 = scmp.eq.s32.totalorder %s20, 1
      %p59 = scmp.ne.s32.totalorder %s54, %s56
      %p60 = scmp.eq.s32.totalorder %s20, 0
      %p61 = por %p59, %p60
      %p62 = scmp.ne.s32.totalorder %s54, %s56
      %p63 = scmp.eq.s32.totalorder %s25, 1
      %p64 = por %p62, %p63
      %p65 = scmp.ne.s32.totalorder %s56, %s57
      %p66 = scmp.eq.s32.totalorder %s25, 0
      %p67 = por %p65, %p66
      %p68 = scmp.ne.s32.totalorder %s56, %s57
      %p69 = scmp.eq.s32.totalorder %s26, 1
      %p70 = por %p68, %p69
      %p72 = scmp.ne.s32.totalorder %s57, %s71
      %p73 = scmp.eq.s32.totalorder %s26, 0
      %p74 = por %p72, %p73
      %s76 = sadd.s32 %s75, 1
      %p79 = scmp.eq.s32.totalorder %s20, 1
      %p80 = scmp.ne.s32.totalorder %s75, %s77
      %p81 = scmp.eq.s32.totalorder %s20, 0
      %p82 = por %p80, %p81
      %p83 = scmp.ne.s32.totalorder %s75, %s77
      %p84 = scmp.eq.s32.totalorder %s25, 1
      %p85 = por %p83, %p84
      %p86 = scmp.ne.s32.totalorder %s77, %s78
      %p87 = scmp.eq.s32.totalorder %s25, 0
      %p88 = por %p86, %p87
      %p89 = scmp.ne.s32.totalorder %s77, %s78
      %p90 = scmp.eq.s32.totalorder %s26, 1
      %p91 = por %p89, %p90
      %p93 = scmp.ne.s32.totalorder %s78, %s92
      %p94 = scmp.eq.s32.totalorder %s26, 0
      %p95 = por %p93, %p94
      %s97 = sadd.s32 %s96, 1
      %p100 = scmp.eq.s32.totalorder %s20, 1
      %p101 = scmp.ne.s32.totalorder %s96, %s98
      %p102 = scmp.eq.s32.totalorder %s20, 0
      %p103 = por %p101, %p102
      %p104 = scmp.ne.s32.totalorder %s96, %s98
      %p105 = scmp.eq.s32.totalorder %s25, 1
      %p106 = por %p104, %p105
      %p107 = scmp.ne.s32.totalorder %s98, %s99
      %p108 = scmp.eq.s32.totalorder %s25, 0
      %p109 = por %p107, %p108
      %p110 = scmp.ne.s32.totalorder %s98, %s99
      %p111 = scmp.eq.s32.totalorder %s26, 1
      %p112 = por %p110, %p111
      %p114 = scmp.ne.s32.totalorder %s99, %s113
      %p115 = scmp.eq.s32.totalorder %s26, 0
      %p116 = por %p114, %p115
      %s118 = sadd.s32 %s117, 1
      %p121 = scmp.eq.s32.totalorder %s20, 1
      %p122 = scmp.ne.s32.totalorder %s117, %s119
      %p123 = scmp.eq.s32.totalorder %s20, 0
      %p124 = por %p122, %p123
      %p125 = scmp.ne.s32.totalorder %s117, %s119
      %p126 = scmp.eq.s32.totalorder %s25, 1
      %p127 = por %p125, %p126
      %p128 = scmp.ne.s32.totalorder %s119, %s120
      %p129 = scmp.eq.s32.totalorder %s25, 0
      %p130 = por %p128, %p129
      %p131 = scmp.ne.s32.totalorder %s119, %s120
      %p132 = scmp.eq.s32.totalorder %s26, 1
      %p133 = por %p131, %p132
      %p135 = scmp.ne.s32.totalorder %s120, %s134
      %p136 = scmp.eq.s32.totalorder %s26, 0
      %p137 = por %p135, %p136
      %s139 = sadd.s32 %s138, 1
      %p142 = scmp.eq.s32.totalorder %s20, 1
      %p143 = scmp.ne.s32.totalorder %s138, %s140
      %p144 = scmp.eq.s32.totalorder %s20, 0
      %p145 = por %p143, %p144
      %p146 = scmp.ne.s32.totalorder %s138, %s140
      %p147 = scmp.eq.s32.totalorder %s25, 1
      %p148 = por %p146, %p147
      %p149 = scmp.ne.s32.totalorder %s140, %s141
      %p150 = scmp.eq.s32.totalorder %s25, 0
      %p151 = por %p149, %p150
      %p152 = scmp.ne.s32.totalorder %s140, %s141
      %p153 = scmp.eq.s32.totalorder %s26, 1
      %p154 = por %p152, %p153
      %p156 = scmp.ne.s32.totalorder %s141, %s155
      %p157 = scmp.eq.s32.totalorder %s26, 0
      %p158 = por %p156, %p157
      %s160 = sadd.s32 %s159, 1
      %p163 = scmp.eq.s32.totalorder %s20, 1
      %p164 = scmp.ne.s32.totalorder %s159, %s161
      %p165 = scmp.eq.s32.totalorder %s20, 0
      %p166 = por %p164, %p165
      %p167 = scmp.ne.s32.totalorder %s159, %s161
      %p168 = scmp.eq.s32.totalorder %s25, 1
      %p169 = por %p167, %p168
      %p170 = scmp.ne.s32.totalorder %s161, %s162
      %p171 = scmp.eq.s32.totalorder %s25, 0
      %p172 = por %p170, %p171
      %p173 = scmp.ne.s32.totalorder %s161, %s162
      %p174 = scmp.eq.s32.totalorder %s26, 1
      %p175 = por %p173, %p174
      %p177 = scmp.ne.s32.totalorder %s162, %s176
      %p178 = scmp.eq.s32.totalorder %s26, 0
      %p179 = por %p177, %p178
      %s181 = sadd.s32 %s180, 1
      %p184 = scmp.eq.s32.totalorder %s20, 1
      %p185 = scmp.ne.s32.totalorder %s180, %s182
      %p186 = scmp.eq.s32.totalorder %s20, 0
      %p187 = por %p185, %p186
      %p188 = scmp.ne.s32.totalorder %s180, %s182
      %p189 = scmp.eq.s32.totalorder %s25, 1
      %p190 = por %p188, %p189
      %p191 = scmp.ne.s32.totalorder %s182, %s183
      %p192 = scmp.eq.s32.totalorder %s25, 0
      %p193 = por %p191, %p192
      %p194 = scmp.ne.s32.totalorder %s182, %s183
      %p195 = scmp.eq.s32.totalorder %s26, 1
      %p196 = por %p194, %p195
      %p198 = scmp.ne.s32.totalorder %s183, %s197
      %p199 = scmp.eq.s32.totalorder %s26, 0
      %p200 = por %p198, %p199
      %s202 = sadd.s32 %s201, 1
      %p205 = scmp.eq.s32.totalorder %s20, 1
      %p206 = scmp.ne.s32.totalorder %s201, %s203
      %p207 = scmp.eq.s32.totalorder %s20, 0
      %p208 = por %p206, %p207
      %p209 = scmp.ne.s32.totalorder %s201, %s203
      %p210 = scmp.eq.s32.totalorder %s25, 1
      %p211 = por %p209, %p210
      %p212 = scmp.ne.s32.totalorder %s203, %s204
      %p213 = scmp.eq.s32.totalorder %s25, 0
      %p214 = por %p212, %p213
      %p215 = scmp.ne.s32.totalorder %s203, %s204
      %p216 = scmp.eq.s32.totalorder %s26, 1
      %p217 = por %p215, %p216
      %p219 = scmp.ne.s32.totalorder %s204, %s218
      %p220 = scmp.eq.s32.totalorder %s26, 0
      %p221 = por %p219, %p220
      %s223 = sadd.s32 %s222, 1
      %p226 = scmp.eq.s32.totalorder %s20, 1
      %p227 = scmp.ne.s32.totalorder %s222, %s224
      %p228 = scmp.eq.s32.totalorder %s20, 0
      %p229 = por %p227, %p228
      %p230 = scmp.ne.s32.totalorder %s222, %s224
      %p231 = scmp.eq.s32.totalorder %s25, 1
      %p232 = por %p230, %p231
      %p233 = scmp.ne.s32.totalorder %s224, %s225
      %p234 = scmp.eq.s32.totalorder %s25, 0
      %p235 = por %p233, %p234
      %p236 = scmp.ne.s32.totalorder %s224, %s225
      %p237 = scmp.eq.s32.totalorder %s26, 1
      %p238 = por %p236, %p237
      %p240 = scmp.ne.s32.totalorder %s225, %s239
      %p241 = scmp.eq.s32.totalorder %s26, 0
      %p242 = por %p240, %p241
      %s244 = sadd.s32 %s243, 1
      %p247 = scmp.eq.s32.totalorder %s20, 1
      %p248 = scmp.ne.s32.totalorder %s243, %s245
      %p249 = scmp.eq.s32.totalorder %s20, 0
      %p250 = por %p248, %p249
      %p251 = scmp.ne.s32.totalorder %s243, %s245
      %p252 = scmp.eq.s32.totalorder %s25, 1
      %p253 = por %p251, %p252
      %p254 = scmp.ne.s32.totalorder %s245, %s246
      %p255 = scmp.eq.s32.totalorder %s25, 0
      %p256 = por %p254, %p255
      %p257 = scmp.ne.s32.totalorder %s245, %s246
      %p258 = scmp.eq.s32.totalorder %s26, 1
      %p259 = por %p257, %p258
      %p261 = scmp.ne.s32.totalorder %s246, %s260
      %p262 = scmp.eq.s32.totalorder %s26, 0
      %p263 = por %p261, %p262
      %s264 = ssub.s32 %s20, %s27
      %p265 = scmp.eq.s32.totalorder %s264, 0
      %s267 = sadd.s32 %s266, 1
      %s268 = scalar_select %p265, %s266, %s267
      %p271 = pneg %p265
      %p272 = scmp.eq.s32.totalorder %s20, 1
      %p273 = por %p271, %p272
      %p274 = scmp.ne.s32.totalorder %s266, %s269
      %p275 = scmp.eq.s32.totalorder %s20, 0
      %p276 = por %p274, %p275
      %p277 = scmp.ne.s32.totalorder %s266, %s269
      %p278 = scmp.eq.s32.totalorder %s25, 1
      %p279 = por %p277, %p278
      %p280 = scmp.ne.s32.totalorder %s269, %s270
      %p281 = scmp.eq.s32.totalorder %s25, 0
      %p282 = por %p280, %p281
      %p283 = scmp.ne.s32.totalorder %s269, %s270
      %p284 = scmp.eq.s32.totalorder %s26, 1
      %p285 = por %p283, %p284
      %p287 = scmp.ne.s32.totalorder %s270, %s286
      %p288 = scmp.eq.s32.totalorder %s26, 0
      %p289 = por %p287, %p288
      %p290 = scmp.le.s32.totalorder 1, %s20
      %p291 = scmp.lt.s32.totalorder %s20, 3
      %p292 = pnand %p290, %p291
      %p293 = pneg %p292
      // Predicated region
      $region9: #{tpu_custom_call.1} parent=5 // pred_check
        _
      $region10: #{tpu_custom_call.1} parent=5 // pred_check_branch
        %295 = sbr.rel (%p292) target = $region12
      $region11: #{tpu_custom_call.1} parent=5 // pred_region
        %s296 = ssub.s32 %s20, 1
        // Predicated region
        $region13: #{tpu_custom_call.1} parent=11 // pred_check
          %p297 = pneg %p67
        $region14: #{tpu_custom_call.1} parent=11 // pred_check_branch
          %299 = sbr.rel (%p297) target = $region16
        $region15: #{tpu_custom_call.1} parent=11 // pred_region
          _
        $region16: #{tpu_custom_call.1} parent=11 // pred_fallthru
          _
        // Predicated region
        $region17: #{tpu_custom_call.1} parent=11 // pred_check
          %p300 = pneg %p88
        $region18: #{tpu_custom_call.1} parent=11 // pred_check_branch
          %302 = sbr.rel (%p300) target = $region20
        $region19: #{tpu_custom_call.1} parent=11 // pred_region
          _
        $region20: #{tpu_custom_call.1} parent=11 // pred_fallthru
          _
        // Predicated region
        $region21: #{tpu_custom_call.1} parent=11 // pred_check
          %p303 = pneg %p109
        $region22: #{tpu_custom_call.1} parent=11 // pred_check_branch
          %305 = sbr.rel (%p303) target = $region24
        $region23: #{tpu_custom_call.1} parent=11 // pred_region
          _
        $region24: #{tpu_custom_call.1} parent=11 // pred_fallthru
          _
        // Predicated region
        $region25: #{tpu_custom_call.1} parent=11 // pred_check
          %p306 = pneg %p130
        $region26: #{tpu_custom_call.1} parent=11 // pred_check_branch
          %308 = sbr.rel (%p306) target = $region28
        $region27: #{tpu_custom_call.1} parent=11 // pred_region
          _
        $region28: #{tpu_custom_call.1} parent=11 // pred_fallthru
          _
        // Predicated region
        $region29: #{tpu_custom_call.1} parent=11 // pred_check
          %p309 = pneg %p151
        $region30: #{tpu_custom_call.1} parent=11 // pred_check_branch
          %311 = sbr.rel (%p309) target = $region32
        $region31: #{tpu_custom_call.1} parent=11 // pred_region
          _
        $region32: #{tpu_custom_call.1} parent=11 // pred_fallthru
          _
        // Predicated region
        $region33: #{tpu_custom_call.1} parent=11 // pred_check
          %p312 = pneg %p172
        $region34: #{tpu_custom_call.1} parent=11 // pred_check_branch
          %314 = sbr.rel (%p312) target = $region36
        $region35: #{tpu_custom_call.1} parent=11 // pred_region
          _
        $region36: #{tpu_custom_call.1} parent=11 // pred_fallthru
          _
        // Predicated region
        $region37: #{tpu_custom_call.1} parent=11 // pred_check
          %p315 = pneg %p193
        $region38: #{tpu_custom_call.1} parent=11 // pred_check_branch
          %317 = sbr.rel (%p315) target = $region40
        $region39: #{tpu_custom_call.1} parent=11 // pred_region
          _
        $region40: #{tpu_custom_call.1} parent=11 // pred_fallthru
          _
        // Predicated region
        $region41: #{tpu_custom_call.1} parent=11 // pred_check
          %p318 = pneg %p214
        $region42: #{tpu_custom_call.1} parent=11 // pred_check_branch
          %320 = sbr.rel (%p318) target = $region44
        $region43: #{tpu_custom_call.1} parent=11 // pred_region
          _
        $region44: #{tpu_custom_call.1} parent=11 // pred_fallthru
          _
        // Predicated region
        $region45: #{tpu_custom_call.1} parent=11 // pred_check
          %p321 = pneg %p235
        $region46: #{tpu_custom_call.1} parent=11 // pred_check_branch
          %323 = sbr.rel (%p321) target = $region48
        $region47: #{tpu_custom_call.1} parent=11 // pred_region
          _
        $region48: #{tpu_custom_call.1} parent=11 // pred_fallthru
          _
        // Predicated region
        $region49: #{tpu_custom_call.1} parent=11 // pred_check
          %p324 = pneg %p256
        $region50: #{tpu_custom_call.1} parent=11 // pred_check_branch
          %326 = sbr.rel (%p324) target = $region52
        $region51: #{tpu_custom_call.1} parent=11 // pred_region
          _
        $region52: #{tpu_custom_call.1} parent=11 // pred_fallthru
          _
      $region12: #{tpu_custom_call.1} parent=5 // pred_fallthru
        _
      %p327 = scmp.lt.s32.totalorder %s20, 2
      // Predicated region
      $region53: #{tpu_custom_call.1} parent=5 // pred_check
        %p328 = pneg %p327
      $region54: #{tpu_custom_call.1} parent=5 // pred_check_branch
        %330 = sbr.rel (%p328) target = $region56
      $region55: #{tpu_custom_call.1} parent=5 // pred_region
        // Predicated region
        $region57: #{tpu_custom_call.1} parent=55 // pred_check
          %p331 = pneg %p40
        $region58: #{tpu_custom_call.1} parent=55 // pred_check_branch
          %333 = sbr.rel (%p331) target = $region60
        $region59: #{tpu_custom_call.1} parent=55 // pred_region
          %p334 = scmp.lt.s32.totalorder %s20, 1
          %s335 = scalar_select %p334, %s20, 1
          %s336 = smul.addr %s335, 2
          %s337 = smul.addr %s336, 4
          %s338 = scalar_lea.vmem %s0, %s337
        $region60: #{tpu_custom_call.1} parent=55 // pred_fallthru
          _
      $region56: #{tpu_custom_call.1} parent=5 // pred_fallthru
        _
      %p339 = scmp.le.s32.totalorder 1, %s20
      %p340 = scmp.lt.s32.totalorder %s20, 3
      %p341 = pnand %p339, %p340
      %p342 = pneg %p341
      // Predicated region
      $region61: #{tpu_custom_call.1} parent=5 // pred_check
        _
      $region62: #{tpu_custom_call.1} parent=5 // pred_check_branch
        %344 = sbr.rel (%p341) target = $region64
      $region63: #{tpu_custom_call.1} parent=5 // pred_region
        %s345 = ssub.s32 %s20, 1
        %p346 = scmp.lt.s32.totalorder %s25, 1
        %s347 = scalar_select %p346, %s25, 1
        %s348 = smul.addr %s347, 2
        %s349 = smul.addr %s348, 4
        %s350 = scalar_lea.vmem %s0, %s349
        %p351 = pneg %p46
        %p352 = pneg %p43
        %p353 = pneg %p67
        %p354 = pneg %p64
        %p355 = pneg %p88
        %p356 = pneg %p85
        %p357 = pneg %p109
        %p358 = pneg %p106
        %p359 = pneg %p130
        %p360 = pneg %p127
        %p361 = pneg %p151
        %p362 = pneg %p148
        %p363 = pneg %p172
        %p364 = pneg %p169
        %p365 = pneg %p193
        %p366 = pneg %p190
        %p367 = pneg %p214
        %p368 = pneg %p211
        %p369 = pneg %p235
        %p370 = pneg %p232
        %p371 = pneg %p256
        %p372 = pneg %p253
        %p373 = pneg %p282
        %p374 = pneg %p279
        %s375 = sand.u32 %s269, 1
        %s376 = scalar_lea.sflag [#allocation3], %s375
        %s377 = sand.u32 %s269, 1
        %s378 = smul.addr %s377, 8
        %s379 = scalar_lea.vmem [#allocation2], %s378
        %p380 = scmp.lt.s32.totalorder %s25, 1
        %s381 = scalar_select %p380, %s25, 1
        %s382 = smul.addr %s381, 2
        %s383 = smul.addr %s382, 4
        %s384 = scalar_lea.vmem %s0, %s383
        %v385 = vld [vmem:[%s384] sm:$0xff]
        %v386 = vld [vmem:[%s1] sm:$0xff]
        %v387 = vld [vmem:[%s1 + $0x8] sm:$0xff]
        %v388 = vld [vmem:[%s1 + $0x10] sm:$0xff]
        %v389 = vld [vmem:[%s1 + $0x18] sm:$0xff]
        %v390 = vld [vmem:[%s1 + $0x20] sm:$0xff]
        %v391 = vld [vmem:[%s1 + $0x28] sm:$0xff]
        %v392 = vld [vmem:[%s1 + $0x30] sm:$0xff]
        %v393 = vld [vmem:[%s1 + $0x38] sm:$0xff]
        %v394 = vld [vmem:[%s1 + $0x40] sm:$0xff]
        %v395 = vld [vmem:[%s1 + $0x48] sm:$0xff]
        %v396 = vld [vmem:[%s1 + $0x50] sm:$0xff]
        %v397 = vld [vmem:[%s1 + $0x58] sm:$0xff]
        %v398 = vld [vmem:[%s1 + $0x60] sm:$0xff]
        %v399 = vld [vmem:[%s1 + $0x68] sm:$0xff]
        %v400 = vld [vmem:[%s1 + $0x70] sm:$0xff]
        %v401 = vld [vmem:[%s1 + $0x78] sm:$0xff]
        %v402 = vld [vmem:[%s1 + $0x80] sm:$0xff]
        %v403 = vld [vmem:[%s1 + $0x88] sm:$0xff]
        %v404 = vld [vmem:[%s1 + $0x90] sm:$0xff]
        %v405 = vld [vmem:[%s1 + $0x98] sm:$0xff]
        %v406 = vld [vmem:[%s1 + $0xa0] sm:$0xff]
        %v407 = vld [vmem:[%s1 + $0xa8] sm:$0xff]
        %v408 = vld [vmem:[%s1 + $0xb0] sm:$0xff]
        %v409 = vld [vmem:[%s1 + $0xb8] sm:$0xff]
        %v410 = vld [vmem:[%s1 + $0xc0] sm:$0xff]
        %v411 = vld [vmem:[%s1 + $0xc8] sm:$0xff]
        %v412 = vld [vmem:[%s1 + $0xd0] sm:$0xff]
        %v413 = vld [vmem:[%s1 + $0xd8] sm:$0xff]
        %v414 = vld [vmem:[%s1 + $0xe0] sm:$0xff]
        %v415 = vld [vmem:[%s1 + $0xe8] sm:$0xff]
        %v416 = vld [vmem:[%s1 + $0xf0] sm:$0xff]
        %v417 = vld [vmem:[%s1 + $0xf8] sm:$0xff]
        %v419 = vcombine.high %v385, %v385
        %421 = vmatprep.subr.mxu0 0.0
        %422 = vmatpush1.msra.mxu0 %v386
        %423 = vmatprep.subr.mxu0 0.0
        %424 = vmatpush1.msra.mxu0 %v387
        %425 = vmatprep.subr.mxu0 0.0
        %426 = vmatpush1.msra.mxu0 %v388
        %427 = vmatprep.subr.mxu0 0.0
        %428 = vmatpush1.msra.mxu0 %v389
        %429 = vmatprep.subr.mxu0 0.0
        %430 = vmatpush1.msra.mxu0 %v390
        %431 = vmatprep.subr.mxu0 0.0
        %432 = vmatpush1.msra.mxu0 %v391
        %433 = vmatprep.subr.mxu0 0.0
        %434 = vmatpush1.msra.mxu0 %v392
        %435 = vmatprep.subr.mxu0 0.0
        %436 = vmatpush1.msra.mxu0 %v393
        %437 = vmatprep.subr.mxu0 0.0
        %438 = vmatpush1.msra.mxu0 %v394
        %439 = vmatprep.subr.mxu0 0.0
        %440 = vmatpush1.msra.mxu0 %v395
        %441 = vmatprep.subr.mxu0 0.0
        %442 = vmatpush1.msra.mxu0 %v396
        %443 = vmatprep.subr.mxu0 0.0
        %444 = vmatpush1.msra.mxu0 %v397
        %445 = vmatprep.subr.mxu0 0.0
        %446 = vmatpush1.msra.mxu0 %v398
        %447 = vmatprep.subr.mxu0 0.0
        %448 = vmatpush1.msra.mxu0 %v399
        %449 = vmatprep.subr.mxu0 0.0
        %450 = vmatpush1.msra.mxu0 %v400
        %451 = vmatprep.subr.mxu0 0.0
        %452 = vmatpush1.msra.mxu0 %v401
        %453 = vmatprep.subr.mxu0 0.0
        %454 = vmatpush1.msra.mxu0 %v402
        %455 = vmatprep.subr.mxu0 0.0
        %456 = vmatpush1.msra.mxu0 %v403
        %457 = vmatprep.subr.mxu0 0.0
        %458 = vmatpush1.msra.mxu0 %v404
        %459 = vmatprep.subr.mxu0 0.0
        %460 = vmatpush1.msra.mxu0 %v405
        %461 = vmatprep.subr.mxu0 0.0
        %462 = vmatpush1.msra.mxu0 %v406
        %463 = vmatprep.subr.mxu0 0.0
        %464 = vmatpush1.msra.mxu0 %v407
        %465 = vmatprep.subr.mxu0 0.0
        %466 = vmatpush1.msra.mxu0 %v408
        %467 = vmatprep.subr.mxu0 0.0
        %468 = vmatpush1.msra.mxu0 %v409
        %469 = vmatprep.subr.mxu0 0.0
        %470 = vmatpush1.msra.mxu0 %v410
        %471 = vmatprep.subr.mxu0 0.0
        %472 = vmatpush1.msra.mxu0 %v411
        %473 = vmatprep.subr.mxu0 0.0
        %474 = vmatpush1.msra.mxu0 %v412
        %475 = vmatprep.subr.mxu0 0.0
        %476 = vmatpush1.msra.mxu0 %v413
        %477 = vmatprep.subr.mxu0 0.0
        %478 = vmatpush1.msra.mxu0 %v414
        %479 = vmatprep.subr.mxu0 0.0
        %480 = vmatpush1.msra.mxu0 %v415
        %481 = vmatprep.subr.mxu0 0.0
        %482 = vmatpush1.msra.mxu0 %v416
        %483 = vmatprep.subr.mxu0 0.0
        %484 = vmatpush1.msra.mxu0 %v417
        %485 = vmatprep.mubr.f32.mxu0 %v419
        %486 = vmatmul.mubr.f32.gmra.mrb[0].mxu0 %v385
        %v487 = vpop.f32.mrb[0].mxu0
        %v488 = vadd.f32 0.0, %v487
        %v489 = vpop.f32.mrb[0].mxu0
        %490 = vdwg.mxu0
        %v491 = vld [vmem:[%s5] sm:$0xff]
        %vm492 = vcmask 31744
        %v494 = vsel %vm492, %v491, 0
        %vm496 = vcmask 1043456
        %v498 = vsel %vm496, %v488, 0
        %500 = vmatprep.subr.mxu0 0.0
        %501 = vmatpush1.msra.mxu0 %v498
        %502 = vmatprep.subr.mxu0 0.0
        %503 = vmatpush1.msra.mxu0 0.0
        %504 = vmatprep.subr.mxu0 0.0
        %505 = vmatpush1.msra.mxu0 0.0
        %506 = vmatprep.subr.mxu0 0.0
        %507 = vmatpush1.msra.mxu0 0.0
        %508 = vmatprep.subr.mxu0 0.0
        %509 = vmatpush1.msra.mxu0 0.0
        %510 = vmatprep.subr.mxu0 0.0
        %511 = vmatpush1.msra.mxu0 0.0
        %512 = vmatprep.subr.mxu0 0.0
        %513 = vmatpush1.msra.mxu0 0.0
        %514 = vmatprep.subr.mxu0 0.0
        %515 = vmatpush1.msra.mxu0 0.0
        %516 = vmatprep.subr.mxu0 0.0
        %517 = vmatpush1.msra.mxu0 0.0
        %518 = vmatprep.subr.mxu0 0.0
        %519 = vmatpush1.msra.mxu0 0.0
        %520 = vmatprep.subr.mxu0 0.0
        %521 = vmatpush1.msra.mxu0 0.0
        %522 = vmatprep.subr.mxu0 0.0
        %523 = vmatpush1.msra.mxu0 0.0
        %524 = vmatprep.subr.mxu0 0.0
        %525 = vmatpush1.msra.mxu0 0.0
        %526 = vmatprep.subr.mxu0 0.0
        %527 = vmatpush1.msra.mxu0 0.0
        %528 = vmatprep.subr.mxu0 0.0
        %529 = vmatpush1.msra.mxu0 0.0
        %530 = vmatprep.subr.mxu0 0.0
        %531 = vmatpush1.msra.mxu0 0.0
        %532 = vmatprep.subr.mxu0 0.0
        %533 = vmatpush1.msra.mxu0 0.0
        %534 = vmatprep.subr.mxu0 0.0
        %535 = vmatpush1.msra.mxu0 0.0
        %536 = vmatprep.subr.mxu0 0.0
        %537 = vmatpush1.msra.mxu0 0.0
        %538 = vmatprep.subr.mxu0 0.0
        %539 = vmatpush1.msra.mxu0 0.0
        %540 = vmatprep.subr.mxu0 0.0
        %541 = vmatpush1.msra.mxu0 0.0
        %542 = vmatprep.subr.mxu0 0.0
        %543 = vmatpush1.msra.mxu0 0.0
        %544 = vmatprep.subr.mxu0 0.0
        %545 = vmatpush1.msra.mxu0 0.0
        %546 = vmatprep.subr.mxu0 0.0
        %547 = vmatpush1.msra.mxu0 0.0
        %548 = vmatprep.subr.mxu0 0.0
        %549 = vmatpush1.msra.mxu0 0.0
        %550 = vmatprep.subr.mxu0 0.0
        %551 = vmatpush1.msra.mxu0 0.0
        %552 = vmatprep.subr.mxu0 0.0
        %553 = vmatpush1.msra.mxu0 0.0
        %554 = vmatprep.subr.mxu0 0.0
        %555 = vmatpush1.msra.mxu0 0.0
        %556 = vmatprep.subr.mxu0 0.0
        %557 = vmatpush1.msra.mxu0 0.0
        %558 = vmatprep.subr.mxu0 0.0
        %559 = vmatpush1.msra.mxu0 0.0
        %560 = vmatprep.subr.mxu0 0.0
        %561 = vmatpush1.msra.mxu0 0.0
        %562 = vmatprep.subr.mxu0 0.0
        %563 = vmatpush1.msra.mxu0 0.0
        %564 = vmatprep.mubr.f32.mxu0 0.0
        %565 = vmatmul.mubr.f32.gmra.mrb[0].mxu0 %v494
        %v566 = vpop.f32.mrb[0].mxu0
        %v567 = vadd.f32 0.0, %v566
        %v568 = vpop.f32.mrb[0].mxu0
        %569 = vdwg.mxu0
        %v570 = vld [vmem:[%s2] sm:$0x1]
        %v572 = vlaneseq
        %v573 = vshrl.u32 %v572, 7
        %v574 = vsub.s32 0, %v573
        %v575 = vrot.slane %v570, %v574
        %v577 = vmul.f32 %v567, %v575
        %v578 = vld [vmem:[%s6] sm:$0xff]
        %580 = vset.pattern.permute.xlu0 0
        %581 = vperm.xlu0 %580, %v578
        %v582 = vpop.permute.xlu0 %581
        %v584 = vadd.f32 %v577, %v582
        %v585 = vadd.f32 %v584, 3.0
        %v586 = vmax.f32 %v585, 0.0
        %v587 = vmin.f32 %v586, 6.0
        %v588 = vmul.f32 %v584, %v587
        %v589 = vmul.f32 %v588, 0.16666667
        %vm590 = vcmp.gt.f32.partialorder %v589, 0.1
        %v591 = vsel %vm590, %v589, 0.0
        %v592 = vadd.f32 %v591, %v591
        %v593 = vld [vmem:[%s7] sm:$0xf]
        %v594 = vld [vmem:[%s8] sm:$0xf]
        %596 = vset.pattern.permute.xlu0 0
        %597 = vperm.xlu0 %596, %v594
        %v598 = vpop.permute.xlu0 %597
        %vm600 = vcmask 64512
        %v602 = vsel %vm600, %v593, 0
        %604 = vmatprep.subr.mxu0 0.0
        %605 = vmatpush1.msra.mxu0 %v592
        %606 = vmatprep.subr.mxu0 0.0
        %607 = vmatpush1.msra.mxu0 0.0
        %608 = vmatprep.subr.mxu0 0.0
        %609 = vmatpush1.msra.mxu0 0.0
        %610 = vmatprep.subr.mxu0 0.0
        %611 = vmatpush1.msra.mxu0 0.0
        %612 = vmatprep.subr.mxu0 0.0
        %613 = vmatpush1.msra.mxu0 0.0
        %614 = vmatprep.subr.mxu0 0.0
        %615 = vmatpush1.msra.mxu0 0.0
        %616 = vmatprep.subr.mxu0 0.0
        %617 = vmatpush1.msra.mxu0 0.0
        %618 = vmatprep.subr.mxu0 0.0
        %619 = vmatpush1.msra.mxu0 0.0
        %620 = vmatprep.subr.mxu0 0.0
        %621 = vmatpush1.msra.mxu0 0.0
        %622 = vmatprep.subr.mxu0 0.0
        %623 = vmatpush1.msra.mxu0 0.0
        %624 = vmatprep.subr.mxu0 0.0
        %625 = vmatpush1.msra.mxu0 0.0
        %626 = vmatprep.subr.mxu0 0.0
        %627 = vmatpush1.msra.mxu0 0.0
        %628 = vmatprep.subr.mxu0 0.0
        %629 = vmatpush1.msra.mxu0 0.0
        %630 = vmatprep.subr.mxu0 0.0
        %631 = vmatpush1.msra.mxu0 0.0
        %632 = vmatprep.subr.mxu0 0.0
        %633 = vmatpush1.msra.mxu0 0.0
        %634 = vmatprep.subr.mxu0 0.0
        %635 = vmatpush1.msra.mxu0 0.0
        %636 = vmatprep.subr.mxu0 0.0
        %637 = vmatpush1.msra.mxu0 0.0
        %638 = vmatprep.subr.mxu0 0.0
        %639 = vmatpush1.msra.mxu0 0.0
        %640 = vmatprep.subr.mxu0 0.0
        %641 = vmatpush1.msra.mxu0 0.0
        %642 = vmatprep.subr.mxu0 0.0
        %643 = vmatpush1.msra.mxu0 0.0
        %644 = vmatprep.subr.mxu0 0.0
        %645 = vmatpush1.msra.mxu0 0.0
        %646 = vmatprep.subr.mxu0 0.0
        %647 = vmatpush1.msra.mxu0 0.0
        %648 = vmatprep.subr.mxu0 0.0
        %649 = vmatpush1.msra.mxu0 0.0
        %650 = vmatprep.subr.mxu0 0.0
        %651 = vmatpush1.msra.mxu0 0.0
        %652 = vmatprep.subr.mxu0 0.0
        %653 = vmatpush1.msra.mxu0 0.0
        %654 = vmatprep.subr.mxu0 0.0
        %655 = vmatpush1.msra.mxu0 0.0
        %656 = vmatprep.subr.mxu0 0.0
        %657 = vmatpush1.msra.mxu0 0.0
        %658 = vmatprep.subr.mxu0 0.0
        %659 = vmatpush1.msra.mxu0 0.0
        %660 = vmatprep.subr.mxu0 0.0
        %661 = vmatpush1.msra.mxu0 0.0
        %662 = vmatprep.subr.mxu0 0.0
        %663 = vmatpush1.msra.mxu0 0.0
        %664 = vmatprep.subr.mxu0 0.0
        %665 = vmatpush1.msra.mxu0 0.0
        %666 = vmatprep.subr.mxu0 0.0
        %667 = vmatpush1.msra.mxu0 0.0
        %668 = vmatprep.mubr.f32.mxu0 0.0
        %669 = vmatmul.mubr.f32.gmra.mrb[0].mxu0 %v602
        %v670 = vpop.f32.mrb[0].mxu0
        %v671 = vadd.f32 %v598, %v670
        %v672 = vpop.f32.mrb[0].mxu0
        %673 = vdwg.mxu0
        %v674 = vxor.u32 %v671, 2147483648
        %v675 = vmul.f32 %v674, 1.442695
        %v676 = vpow.pop %v675
        %v677 = vadd.f32 %v676, 1.0
        %v678 = vrcp.pop %v677
        %v679 = vmul.f32 1.0, %v678
        %v680 = vld [vmem:[%s9] sm:$0xf]
        %v681 = vld [vmem:[%s10] sm:$0xf]
        %683 = vset.pattern.permute.xlu0 0
        %684 = vperm.xlu0 %683, %v681
        %v685 = vpop.permute.xlu0 %684
        %688 = vrot.lane.b32.xlu0 %v592, 112
        %v689 = vpop.permute.xlu0 %688
        %v692 = vsel %vm600, %v680, 0
        %694 = vmatprep.subr.mxu0 0.0
        %695 = vmatpush1.msra.mxu0 %v689
        %696 = vmatprep.subr.mxu0 0.0
        %697 = vmatpush1.msra.mxu0 0.0
        %698 = vmatprep.subr.mxu0 0.0
        %699 = vmatpush1.msra.mxu0 0.0
        %700 = vmatprep.subr.mxu0 0.0
        %701 = vmatpush1.msra.mxu0 0.0
        %702 = vmatprep.subr.mxu0 0.0
        %703 = vmatpush1.msra.mxu0 0.0
        %704 = vmatprep.subr.mxu0 0.0
        %705 = vmatpush1.msra.mxu0 0.0
        %706 = vmatprep.subr.mxu0 0.0
        %707 = vmatpush1.msra.mxu0 0.0
        %708 = vmatprep.subr.mxu0 0.0
        %709 = vmatpush1.msra.mxu0 0.0
        %710 = vmatprep.subr.mxu0 0.0
        %711 = vmatpush1.msra.mxu0 0.0
        %712 = vmatprep.subr.mxu0 0.0
        %713 = vmatpush1.msra.mxu0 0.0
        %714 = vmatprep.subr.mxu0 0.0
        %715 = vmatpush1.msra.mxu0 0.0
        %716 = vmatprep.subr.mxu0 0.0
        %717 = vmatpush1.msra.mxu0 0.0
        %718 = vmatprep.subr.mxu0 0.0
        %719 = vmatpush1.msra.mxu0 0.0
        %720 = vmatprep.subr.mxu0 0.0
        %721 = vmatpush1.msra.mxu0 0.0
        %722 = vmatprep.subr.mxu0 0.0
        %723 = vmatpush1.msra.mxu0 0.0
        %724 = vmatprep.subr.mxu0 0.0
        %725 = vmatpush1.msra.mxu0 0.0
        %726 = vmatprep.subr.mxu0 0.0
        %727 = vmatpush1.msra.mxu0 0.0
        %728 = vmatprep.subr.mxu0 0.0
        %729 = vmatpush1.msra.mxu0 0.0
        %730 = vmatprep.subr.mxu0 0.0
        %731 = vmatpush1.msra.mxu0 0.0
        %732 = vmatprep.subr.mxu0 0.0
        %733 = vmatpush1.msra.mxu0 0.0
        %734 = vmatprep.subr.mxu0 0.0
        %735 = vmatpush1.msra.mxu0 0.0
        %736 = vmatprep.subr.mxu0 0.0
        %737 = vmatpush1.msra.mxu0 0.0
        %738 = vmatprep.subr.mxu0 0.0
        %739 = vmatpush1.msra.mxu0 0.0
        %740 = vmatprep.subr.mxu0 0.0
        %741 = vmatpush1.msra.mxu0 0.0
        %742 = vmatprep.subr.mxu0 0.0
        %743 = vmatpush1.msra.mxu0 0.0
        %744 = vmatprep.subr.mxu0 0.0
        %745 = vmatpush1.msra.mxu0 0.0
        %746 = vmatprep.subr.mxu0 0.0
        %747 = vmatpush1.msra.mxu0 0.0
        %748 = vmatprep.subr.mxu0 0.0
        %749 = vmatpush1.msra.mxu0 0.0
        %750 = vmatprep.subr.mxu0 0.0
        %751 = vmatpush1.msra.mxu0 0.0
        %752 = vmatprep.subr.mxu0 0.0
        %753 = vmatpush1.msra.mxu0 0.0
        %754 = vmatprep.subr.mxu0 0.0
        %755 = vmatpush1.msra.mxu0 0.0
        %756 = vmatprep.subr.mxu0 0.0
        %757 = vmatpush1.msra.mxu0 0.0
        %758 = vmatprep.mubr.f32.mxu0 0.0
        %759 = vmatmul.mubr.f32.gmra.mrb[0].mxu0 %v692
        %v760 = vpop.f32.mrb[0].mxu0
        %v761 = vadd.f32 %v685, %v760
        %v762 = vpop.f32.mrb[0].mxu0
        %763 = vdwg.mxu0
        %v764 = vxor.u32 %v761, 2147483648
        %v765 = vmul.f32 %v764, 1.442695
        %v766 = vpow.pop %v765
        %v767 = vadd.f32 %v766, 1.0
        %v768 = vrcp.pop %v767
        %v769 = vmul.f32 1.0, %v768
        %v770 = vld [vmem:[%s3] sm:$0xff]
        %v771 = vld [vmem:[%s3 + $0x8] sm:$0xff]
        %v772 = vld [vmem:[%s3 + $0x10] sm:$0xff]
        %v773 = vld [vmem:[%s3 + $0x18] sm:$0xff]
        %vm774 = vcmask 130048
        %v776 = vsel %vm774, %v679, 0
        %778 = vmatprep.subr.mxu0 %v771
        %779 = vmatpush1.msra.mxu0 %v770
        %780 = vmatprep.subr.mxu0 %v773
        %781 = vmatpush1.msra.mxu0 %v772
        %782 = vmatprep.subr.mxu0 0.0
        %783 = vmatpush1.msra.mxu0 0.0
        %784 = vmatprep.subr.mxu0 0.0
        %785 = vmatpush1.msra.mxu0 0.0
        %786 = vmatprep.subr.mxu0 0.0
        %787 = vmatpush1.msra.mxu0 0.0
        %788 = vmatprep.subr.mxu0 0.0
        %789 = vmatpush1.msra.mxu0 0.0
        %790 = vmatprep.subr.mxu0 0.0
        %791 = vmatpush1.msra.mxu0 0.0
        %792 = vmatprep.subr.mxu0 0.0
        %793 = vmatpush1.msra.mxu0 0.0
        %794 = vmatprep.subr.mxu0 0.0
        %795 = vmatpush1.msra.mxu0 0.0
        %796 = vmatprep.subr.mxu0 0.0
        %797 = vmatpush1.msra.mxu0 0.0
        %798 = vmatprep.subr.mxu0 0.0
        %799 = vmatpush1.msra.mxu0 0.0
        %800 = vmatprep.subr.mxu0 0.0
        %801 = vmatpush1.msra.mxu0 0.0
        %802 = vmatprep.subr.mxu0 0.0
        %803 = vmatpush1.msra.mxu0 0.0
        %804 = vmatprep.subr.mxu0 0.0
        %805 = vmatpush1.msra.mxu0 0.0
        %806 = vmatprep.subr.mxu0 0.0
        %807 = vmatpush1.msra.mxu0 0.0
        %808 = vmatprep.subr.mxu0 0.0
        %809 = vmatpush1.msra.mxu0 0.0
        %810 = vmatprep.subr.mxu0 0.0
        %811 = vmatpush1.msra.mxu0 0.0
        %812 = vmatprep.subr.mxu0 0.0
        %813 = vmatpush1.msra.mxu0 0.0
        %814 = vmatprep.subr.mxu0 0.0
        %815 = vmatpush1.msra.mxu0 0.0
        %816 = vmatprep.subr.mxu0 0.0
        %817 = vmatpush1.msra.mxu0 0.0
        %818 = vmatprep.subr.mxu0 0.0
        %819 = vmatpush1.msra.mxu0 0.0
        %820 = vmatprep.subr.mxu0 0.0
        %821 = vmatpush1.msra.mxu0 0.0
        %822 = vmatprep.subr.mxu0 0.0
        %823 = vmatpush1.msra.mxu0 0.0
        %824 = vmatprep.subr.mxu0 0.0
        %825 = vmatpush1.msra.mxu0 0.0
        %826 = vmatprep.subr.mxu0 0.0
        %827 = vmatpush1.msra.mxu0 0.0
        %828 = vmatprep.subr.mxu0 0.0
        %829 = vmatpush1.msra.mxu0 0.0
        %830 = vmatprep.subr.mxu0 0.0
        %831 = vmatpush1.msra.mxu0 0.0
        %832 = vmatprep.subr.mxu0 0.0
        %833 = vmatpush1.msra.mxu0 0.0
        %834 = vmatprep.subr.mxu0 0.0
        %835 = vmatpush1.msra.mxu0 0.0
        %836 = vmatprep.subr.mxu0 0.0
        %837 = vmatpush1.msra.mxu0 0.0
        %838 = vmatprep.subr.mxu0 0.0
        %839 = vmatpush1.msra.mxu0 0.0
        %840 = vmatprep.subr.mxu0 0.0
        %841 = vmatpush1.msra.mxu0 0.0
        %842 = vmatprep.mubr.f32.mxu0 0.0
        %843 = vmatmul.mubr.f32.gmra.mrb[0].mxu0 %v776
        %v844 = vpop.f32.mrb[0].mxu0
        %v845 = vadd.f32 0.0, %v844
        %v846 = vpop.f32.mrb[0].mxu0
        %v847 = vadd.f32 0.0, %v846
        %848 = vdwg.mxu0
        %v849 = vld [vmem:[%s4] sm:$0xff]
        %v850 = vld [vmem:[%s4 + $0x8] sm:$0xff]
        %v851 = vld [vmem:[%s4 + $0x10] sm:$0xff]
        %v852 = vld [vmem:[%s4 + $0x18] sm:$0xff]
        %v854 = vsel %vm774, %v769, 0
        %856 = vmatprep.subr.mxu0 %v850
        %857 = vmatpush1.msra.mxu0 %v849
        %858 = vmatprep.subr.mxu0 %v852
        %859 = vmatpush1.msra.mxu0 %v851
        %860 = vmatprep.subr.mxu0 0.0
        %861 = vmatpush1.msra.mxu0 0.0
        %862 = vmatprep.subr.mxu0 0.0
        %863 = vmatpush1.msra.mxu0 0.0
        %864 = vmatprep.subr.mxu0 0.0
        %865 = vmatpush1.msra.mxu0 0.0
        %866 = vmatprep.subr.mxu0 0.0
        %867 = vmatpush1.msra.mxu0 0.0
        %868 = vmatprep.subr.mxu0 0.0
        %869 = vmatpush1.msra.mxu0 0.0
        %870 = vmatprep.subr.mxu0 0.0
        %871 = vmatpush1.msra.mxu0 0.0
        %872 = vmatprep.subr.mxu0 0.0
        %873 = vmatpush1.msra.mxu0 0.0
        %874 = vmatprep.subr.mxu0 0.0
        %875 = vmatpush1.msra.mxu0 0.0
        %876 = vmatprep.subr.mxu0 0.0
        %877 = vmatpush1.msra.mxu0 0.0
        %878 = vmatprep.subr.mxu0 0.0
        %879 = vmatpush1.msra.mxu0 0.0
        %880 = vmatprep.subr.mxu0 0.0
        %881 = vmatpush1.msra.mxu0 0.0
        %882 = vmatprep.subr.mxu0 0.0
        %883 = vmatpush1.msra.mxu0 0.0
        %884 = vmatprep.subr.mxu0 0.0
        %885 = vmatpush1.msra.mxu0 0.0
        %886 = vmatprep.subr.mxu0 0.0
        %887 = vmatpush1.msra.mxu0 0.0
        %888 = vmatprep.subr.mxu0 0.0
        %889 = vmatpush1.msra.mxu0 0.0
        %890 = vmatprep.subr.mxu0 0.0
        %891 = vmatpush1.msra.mxu0 0.0
        %892 = vmatprep.subr.mxu0 0.0
        %893 = vmatpush1.msra.mxu0 0.0
        %894 = vmatprep.subr.mxu0 0.0
        %895 = vmatpush1.msra.mxu0 0.0
        %896 = vmatprep.subr.mxu0 0.0
        %897 = vmatpush1.msra.mxu0 0.0
        %898 = vmatprep.subr.mxu0 0.0
        %899 = vmatpush1.msra.mxu0 0.0
        %900 = vmatprep.subr.mxu0 0.0
        %901 = vmatpush1.msra.mxu0 0.0
        %902 = vmatprep.subr.mxu0 0.0
        %903 = vmatpush1.msra.mxu0 0.0
        %904 = vmatprep.subr.mxu0 0.0
        %905 = vmatpush1.msra.mxu0 0.0
        %906 = vmatprep.subr.mxu0 0.0
        %907 = vmatpush1.msra.mxu0 0.0
        %908 = vmatprep.subr.mxu0 0.0
        %909 = vmatpush1.msra.mxu0 0.0
        %910 = vmatprep.subr.mxu0 0.0
        %911 = vmatpush1.msra.mxu0 0.0
        %912 = vmatprep.subr.mxu0 0.0
        %913 = vmatpush1.msra.mxu0 0.0
        %914 = vmatprep.subr.mxu0 0.0
        %915 = vmatpush1.msra.mxu0 0.0
        %916 = vmatprep.subr.mxu0 0.0
        %917 = vmatpush1.msra.mxu0 0.0
        %918 = vmatprep.subr.mxu0 0.0
        %919 = vmatpush1.msra.mxu0 0.0
        %920 = vmatprep.mubr.f32.mxu0 0.0
        %921 = vmatmul.mubr.f32.gmra.mrb[0].mxu0 %v854
        %v922 = vpop.f32.mrb[0].mxu0
        %v923 = vadd.f32 0.0, %v922
        %v924 = vpop.f32.mrb[0].mxu0
        %v925 = vadd.f32 0.0, %v924
        %926 = vdwg.mxu0
        %v927 = vmul.f32 %v845, %v923
        %v928 = vmul.f32 %v847, %v925
        %v931 = vcombine.low %v927, %v928
        %v933 = vmul.f32 %v385, %v931
        %934 = vst [vmem:[%s379] sm:$0xff] %v933
        %s935 = sand.u32 %s269, 1
        %s936 = scalar_lea.sflag [#allocation3], %s935
        %s937 = sand.u32 %s269, 1
        %s938 = smul.addr %s937, 8
        %s939 = scalar_lea.vmem [#allocation2], %s938
        // Predicated region
        $region65: #{tpu_custom_call.1} parent=63 // pred_check
          %p940 = pneg %p279
        $region66: #{tpu_custom_call.1} parent=63 // pred_check_branch
          %942 = sbr.rel (%p940) target = $region68
        $region67: #{tpu_custom_call.1} parent=63 // pred_region
          %s944 = ssub.s32 128, 128
          %945 = vsyncadd %s936, %s944
          %s946 = smul.addr %s25, 2
          %s947 = smul.addr %s946, 64
          %s948 = scalar_lea.hbm %s11, %s947
          %s950 = sshll.u32 %s939, 4
          %s951 = int_to_ptr.vmem [resolvable:$true] %s950
          %953 = dma.vmem_to_hbm [thread:$0]  %s951, 128, %s948, %s936
        $region68: #{tpu_custom_call.1} parent=63 // pred_fallthru
          _
      $region64: #{tpu_custom_call.1} parent=5 // pred_fallthru
        _
      %p954 = scmp.le.s32.totalorder 2, %s20
      // Predicated region
      $region69: #{tpu_custom_call.1} parent=5 // pred_check
        %p955 = pneg %p954
      $region70: #{tpu_custom_call.1} parent=5 // pred_check_branch
        %957 = sbr.rel (%p955) target = $region72
      $region71: #{tpu_custom_call.1} parent=5 // pred_region
        %s958 = ssub.s32 %s20, 2
        // Predicated region
        $region73: #{tpu_custom_call.1} parent=71 // pred_check
          %p959 = pneg %p285
        $region74: #{tpu_custom_call.1} parent=71 // pred_check_branch
          %961 = sbr.rel (%p959) target = $region76
        $region75: #{tpu_custom_call.1} parent=71 // pred_region
          %s962 = sand.u32 %s270, 1
          %s963 = scalar_lea.sflag [#allocation3], %s962
          %s964 = sand.u32 %s270, 1
          %s965 = smul.addr %s964, 8
          %s966 = scalar_lea.vmem [#allocation2], %s965
          %967 = dma.done %s963, 128
        $region76: #{tpu_custom_call.1} parent=71 // pred_fallthru
          _
      $region72: #{tpu_custom_call.1} parent=5 // pred_fallthru
        _
    $region6: #{tpu_custom_call.1} parent=1 // loop_footer
      %s24 = sadd.s32 1, %s20
    $region7: #{tpu_custom_call.1} parent=1 // loop_footer_branch
      %19 = sbr.rel target = $region3
    $region8: #{tpu_custom_call.1} parent=1 // loop_exit
      _
    %968 = vsyncpa [#allocation3], 1
    %s969 = scalar_lea.sflag [#allocation3], 1
    %970 = vsyncpa %s969, 1

// kernel: tpu_custom_call.1
$region0: #{tpu_custom_call.1}
  #allocation0 [shape = 'u32[]', space=smem, size = 0x4, offset = 0x4, fixed_abs, tag = 'smem constant byte address 0x4 - core index']
  #allocation1 [shape = 'u32[144,128]{1,0:T(1,128)}', space=vmem, size = 0x12000, scoped, tag = 'internal scratch']
  %s0 = inlined_call_operand.vmem [shape: f32[2,4,256], index: 0, kind: input, shape index: {}]
  %s1 = inlined_call_operand.vmem [shape: f32[256,32], index: 1, kind: input, shape index: {}]
  %s2 = inlined_call_operand.vmem [shape: f32[1,32], index: 2, kind: input, shape index: {}]
  %s3 = inlined_call_operand.vmem [shape: f32[16,256], index: 3, kind: input, shape index: {}]
  %s4 = inlined_call_operand.vmem [shape: f32[16,256], index: 4, kind: input, shape index: {}]
  %s5 = inlined_call_operand.vmem [shape: f32[8,4], index: 5, kind: input, shape index: {}]
  %s6 = inlined_call_operand.vmem [shape: f32[8,1], index: 6, kind: input, shape index: {}]
  %s7 = inlined_call_operand.vmem [shape: f32[4,8], index: 7, kind: input, shape index: {}]
  %s8 = inlined_call_operand.vmem [shape: f32[4,1], index: 8, kind: input, shape index: {}]
  %s9 = inlined_call_operand.vmem [shape: f32[4,8], index: 9, kind: input, shape index: {}]
  %s10 = inlined_call_operand.vmem [shape: f32[4,1], index: 10, kind: input, shape index: {}]
  %s11 = inlined_call_operand.hbm [shape: f32[2,4,256], index: 11, kind: output, shape index: {}]
  %s12 = sld [smem:[#allocation0]]
  $region77: #{tpu_custom_call.1} parent=0
    _
  %s14 = ssub.s32 1, %s12
  %s15 = scalar_select 0, %s14, %s12
  $region1: #{tpu_custom_call.1} parent=0
    #allocation2 [shape = 'u8[8192]{0}', space=vmem, size = 0x2000, scoped, tag = 'output window, operand 0']
    #allocation3 [shape = 's32[2]{0}', space=sflag, size = 0x8, scoped, tag = 'scoped memory for tpu_custom_call.1']
    %16 = vsyncpa [#allocation3], 0
    %s17 = scalar_lea.sflag [#allocation3], 1
    %18 = vsyncpa %s17, 0
    loop: start=0, step=1, limit=4
    $region2: #{tpu_custom_call.1} parent=1 // loop_pre_header
      _
    $region3: #{tpu_custom_call.1} parent=1 // loop_header
      %s20 = sphi 0, %s24
      %p21 = scmp.ge.s32.totalorder %s20, 4
      %s30 = sphi 0, %s32
      %s33 = sphi 0, %s30
      %s34 = sphi 0, %s33
      %s50 = sphi 0, %s34
      %s54 = sphi 0, %s54
      %s56 = sphi 0, %s54
      %s57 = sphi 0, %s56
      %s71 = sphi 0, %s57
      %s75 = sphi 0, %s75
      %s77 = sphi 0, %s75
      %s78 = sphi 0, %s77
      %s92 = sphi 0, %s78
      %s96 = sphi 0, %s96
      %s98 = sphi 0, %s96
      %s99 = sphi 0, %s98
      %s113 = sphi 0, %s99
      %s117 = sphi 0, %s117
      %s119 = sphi 0, %s117
      %s120 = sphi 0, %s119
      %s134 = sphi 0, %s120
      %s138 = sphi 0, %s138
      %s140 = sphi 0, %s138
      %s141 = sphi 0, %s140
      %s155 = sphi 0, %s141
      %s159 = sphi 0, %s159
      %s161 = sphi 0, %s159
      %s162 = sphi 0, %s161
      %s176 = sphi 0, %s162
      %s180 = sphi 0, %s180
      %s182 = sphi 0, %s180
      %s183 = sphi 0, %s182
      %s197 = sphi 0, %s183
      %s201 = sphi 0, %s201
      %s203 = sphi 0, %s201
      %s204 = sphi 0, %s203
      %s218 = sphi 0, %s204
      %s222 = sphi 0, %s222
      %s224 = sphi 0, %s222
      %s225 = sphi 0, %s224
      %s239 = sphi 0, %s225
      %s243 = sphi 0, %s243
      %s245 = sphi 0, %s243
      %s246 = sphi 0, %s245
      %s260 = sphi 0, %s246
      %s266 = sphi 0, %s268
      %s269 = sphi 0, %s266
      %s270 = sphi 0, %s269
      %s286 = sphi 0, %s270
    $region4: #{tpu_custom_call.1} parent=1 // loop_header_branch
      %23 = sbr.rel (%p21) target = $region8
    $region5: #{tpu_custom_call.1} parent=1 // loop_body
      %s25 = ssub.s32 %s20, 1
      %s26 = ssub.s32 %s20, 2
      %s27 = sadd.s32 %s20, 1
      %s28 = ssub.s32 %s20, %s27
      %p29 = scmp.eq.s32.totalorder %s28, 0
      %s31 = sadd.s32 %s30, 1
      %s32 = scalar_select %p29, %s30, %s31
      %p35 = pneg %p29
      %p36 = scmp.eq.s32.totalorder %s20, 1
      %p37 = por %p35, %p36
      %p38 = scmp.ne.s32.totalorder %s30, %s33
      %p39 = scmp.eq.s32.totalorder %s20, 0
      %p40 = por %p38, %p39
      %p41 = scmp.ne.s32.totalorder %s30, %s33
      %p42 = scmp.eq.s32.totalorder %s25, 1
      %p43 = por %p41, %p42
      %p44 = scmp.ne.s32.totalorder %s33, %s34
      %p45 = scmp.eq.s32.totalorder %s25, 0
      %p46 = por %p44, %p45
      %p47 = scmp.ne.s32.totalorder %s33, %s34
      %p48 = scmp.eq.s32.totalorder %s26, 1
      %p49 = por %p47, %p48
      %p51 = scmp.ne.s32.totalorder %s34, %s50
      %p52 = scmp.eq.s32.totalorder %s26, 0
      %p53 = por %p51, %p52
      %s55 = sadd.s32 %s54, 1
      %p58 = scmp.eq.s32.totalorder %s20, 1
      %p59 = scmp.ne.s32.totalorder %s54, %s56
      %p60 = scmp.eq.s32.totalorder %s20, 0
      %p61 = por %p59, %p60
      %p62 = scmp.ne.s32.totalorder %s54, %s56
      %p63 = scmp.eq.s32.totalorder %s25, 1
      %p64 = por %p62, %p63
      %p65 = scmp.ne.s32.totalorder %s56, %s57
      %p66 = scmp.eq.s32.totalorder %s25, 0
      %p67 = por %p65, %p66
      %p68 = scmp.ne.s32.totalorder %s56, %s57
      %p69 = scmp.eq.s32.totalorder %s26, 1
      %p70 = por %p68, %p69
      %p72 = scmp.ne.s32.totalorder %s57, %s71
      %p73 = scmp.eq.s32.totalorder %s26, 0
      %p74 = por %p72, %p73
      %s76 = sadd.s32 %s75, 1
      %p79 = scmp.eq.s32.totalorder %s20, 1
      %p80 = scmp.ne.s32.totalorder %s75, %s77
      %p81 = scmp.eq.s32.totalorder %s20, 0
      %p82 = por %p80, %p81
      %p83 = scmp.ne.s32.totalorder %s75, %s77
      %p84 = scmp.eq.s32.totalorder %s25, 1
      %p85 = por %p83, %p84
      %p86 = scmp.ne.s32.totalorder %s77, %s78
      %p87 = scmp.eq.s32.totalorder %s25, 0
      %p88 = por %p86, %p87
      %p89 = scmp.ne.s32.totalorder %s77, %s78
      %p90 = scmp.eq.s32.totalorder %s26, 1
      %p91 = por %p89, %p90
      %p93 = scmp.ne.s32.totalorder %s78, %s92
      %p94 = scmp.eq.s32.totalorder %s26, 0
      %p95 = por %p93, %p94
      %s97 = sadd.s32 %s96, 1
      %p100 = scmp.eq.s32.totalorder %s20, 1
      %p101 = scmp.ne.s32.totalorder %s96, %s98
      %p102 = scmp.eq.s32.totalorder %s20, 0
      %p103 = por %p101, %p102
      %p104 = scmp.ne.s32.totalorder %s96, %s98
      %p105 = scmp.eq.s32.totalorder %s25, 1
      %p106 = por %p104, %p105
      %p107 = scmp.ne.s32.totalorder %s98, %s99
      %p108 = scmp.eq.s32.totalorder %s25, 0
      %p109 = por %p107, %p108
      %p110 = scmp.ne.s32.totalorder %s98, %s99
      %p111 = scmp.eq.s32.totalorder %s26, 1
      %p112 = por %p110, %p111
      %p114 = scmp.ne.s32.totalorder %s99, %s113
      %p115 = scmp.eq.s32.totalorder %s26, 0
      %p116 = por %p114, %p115
      %s118 = sadd.s32 %s117, 1
      %p121 = scmp.eq.s32.totalorder %s20, 1
      %p122 = scmp.ne.s32.totalorder %s117, %s119
      %p123 = scmp.eq.s32.totalorder %s20, 0
      %p124 = por %p122, %p123
      %p125 = scmp.ne.s32.totalorder %s117, %s119
      %p126 = scmp.eq.s32.totalorder %s25, 1
      %p127 = por %p125, %p126
      %p128 = scmp.ne.s32.totalorder %s119, %s120
      %p129 = scmp.eq.s32.totalorder %s25, 0
      %p130 = por %p128, %p129
      %p131 = scmp.ne.s32.totalorder %s119, %s120
      %p132 = scmp.eq.s32.totalorder %s26, 1
      %p133 = por %p131, %p132
      %p135 = scmp.ne.s32.totalorder %s120, %s134
      %p136 = scmp.eq.s32.totalorder %s26, 0
      %p137 = por %p135, %p136
      %s139 = sadd.s32 %s138, 1
      %p142 = scmp.eq.s32.totalorder %s20, 1
      %p143 = scmp.ne.s32.totalorder %s138, %s140
      %p144 = scmp.eq.s32.totalorder %s20, 0
      %p145 = por %p143, %p144
      %p146 = scmp.ne.s32.totalorder %s138, %s140
      %p147 = scmp.eq.s32.totalorder %s25, 1
      %p148 = por %p146, %p147
      %p149 = scmp.ne.s32.totalorder %s140, %s141
      %p150 = scmp.eq.s32.totalorder %s25, 0
      %p151 = por %p149, %p150
      %p152 = scmp.ne.s32.totalorder %s140, %s141
      %p153 = scmp.eq.s32.totalorder %s26, 1
      %p154 = por %p152, %p153
      %p156 = scmp.ne.s32.totalorder %s141, %s155
      %p157 = scmp.eq.s32.totalorder %s26, 0
      %p158 = por %p156, %p157
      %s160 = sadd.s32 %s159, 1
      %p163 = scmp.eq.s32.totalorder %s20, 1
      %p164 = scmp.ne.s32.totalorder %s159, %s161
      %p165 = scmp.eq.s32.totalorder %s20, 0
      %p166 = por %p164, %p165
      %p167 = scmp.ne.s32.totalorder %s159, %s161
      %p168 = scmp.eq.s32.totalorder %s25, 1
      %p169 = por %p167, %p168
      %p170 = scmp.ne.s32.totalorder %s161, %s162
      %p171 = scmp.eq.s32.totalorder %s25, 0
      %p172 = por %p170, %p171
      %p173 = scmp.ne.s32.totalorder %s161, %s162
      %p174 = scmp.eq.s32.totalorder %s26, 1
      %p175 = por %p173, %p174
      %p177 = scmp.ne.s32.totalorder %s162, %s176
      %p178 = scmp.eq.s32.totalorder %s26, 0
      %p179 = por %p177, %p178
      %s181 = sadd.s32 %s180, 1
      %p184 = scmp.eq.s32.totalorder %s20, 1
      %p185 = scmp.ne.s32.totalorder %s180, %s182
      %p186 = scmp.eq.s32.totalorder %s20, 0
      %p187 = por %p185, %p186
      %p188 = scmp.ne.s32.totalorder %s180, %s182
      %p189 = scmp.eq.s32.totalorder %s25, 1
      %p190 = por %p188, %p189
      %p191 = scmp.ne.s32.totalorder %s182, %s183
      %p192 = scmp.eq.s32.totalorder %s25, 0
      %p193 = por %p191, %p192
      %p194 = scmp.ne.s32.totalorder %s182, %s183
      %p195 = scmp.eq.s32.totalorder %s26, 1
      %p196 = por %p194, %p195
      %p198 = scmp.ne.s32.totalorder %s183, %s197
      %p199 = scmp.eq.s32.totalorder %s26, 0
      %p200 = por %p198, %p199
      %s202 = sadd.s32 %s201, 1
      %p205 = scmp.eq.s32.totalorder %s20, 1
      %p206 = scmp.ne.s32.totalorder %s201, %s203
      %p207 = scmp.eq.s32.totalorder %s20, 0
      %p208 = por %p206, %p207
      %p209 = scmp.ne.s32.totalorder %s201, %s203
      %p210 = scmp.eq.s32.totalorder %s25, 1
      %p211 = por %p209, %p210
      %p212 = scmp.ne.s32.totalorder %s203, %s204
      %p213 = scmp.eq.s32.totalorder %s25, 0
      %p214 = por %p212, %p213
      %p215 = scmp.ne.s32.totalorder %s203, %s204
      %p216 = scmp.eq.s32.totalorder %s26, 1
      %p217 = por %p215, %p216
      %p219 = scmp.ne.s32.totalorder %s204, %s218
      %p220 = scmp.eq.s32.totalorder %s26, 0
      %p221 = por %p219, %p220
      %s223 = sadd.s32 %s222, 1
      %p226 = scmp.eq.s32.totalorder %s20, 1
      %p227 = scmp.ne.s32.totalorder %s222, %s224
      %p228 = scmp.eq.s32.totalorder %s20, 0
      %p229 = por %p227, %p228
      %p230 = scmp.ne.s32.totalorder %s222, %s224
      %p231 = scmp.eq.s32.totalorder %s25, 1
      %p232 = por %p230, %p231
      %p233 = scmp.ne.s32.totalorder %s224, %s225
      %p234 = scmp.eq.s32.totalorder %s25, 0
      %p235 = por %p233, %p234
      %p236 = scmp.ne.s32.totalorder %s224, %s225
      %p237 = scmp.eq.s32.totalorder %s26, 1
      %p238 = por %p236, %p237
      %p240 = scmp.ne.s32.totalorder %s225, %s239
      %p241 = scmp.eq.s32.totalorder %s26, 0
      %p242 = por %p240, %p241
      %s244 = sadd.s32 %s243, 1
      %p247 = scmp.eq.s32.totalorder %s20, 1
      %p248 = scmp.ne.s32.totalorder %s243, %s245
      %p249 = scmp.eq.s32.totalorder %s20, 0
      %p250 = por %p248, %p249
      %p251 = scmp.ne.s32.totalorder %s243, %s245
      %p252 = scmp.eq.s32.totalorder %s25, 1
      %p253 = por %p251, %p252
      %p254 = scmp.ne.s32.totalorder %s245, %s246
      %p255 = scmp.eq.s32.totalorder %s25, 0
      %p256 = por %p254, %p255
      %p257 = scmp.ne.s32.totalorder %s245, %s246
      %p258 = scmp.eq.s32.totalorder %s26, 1
      %p259 = por %p257, %p258
      %p261 = scmp.ne.s32.totalorder %s246, %s260
      %p262 = scmp.eq.s32.totalorder %s26, 0
      %p263 = por %p261, %p262
      %s264 = ssub.s32 %s20, %s27
      %p265 = scmp.eq.s32.totalorder %s264, 0
      %s267 = sadd.s32 %s266, 1
      %s268 = scalar_select %p265, %s266, %s267
      %p271 = pneg %p265
      %p272 = scmp.eq.s32.totalorder %s20, 1
      %p273 = por %p271, %p272
      %p274 = scmp.ne.s32.totalorder %s266, %s269
      %p275 = scmp.eq.s32.totalorder %s20, 0
      %p276 = por %p274, %p275
      %p277 = scmp.ne.s32.totalorder %s266, %s269
      %p278 = scmp.eq.s32.totalorder %s25, 1
      %p279 = por %p277, %p278
      %p280 = scmp.ne.s32.totalorder %s269, %s270
      %p281 = scmp.eq.s32.totalorder %s25, 0
      %p282 = por %p280, %p281
      %p283 = scmp.ne.s32.totalorder %s269, %s270
      %p284 = scmp.eq.s32.totalorder %s26, 1
      %p285 = por %p283, %p284
      %p287 = scmp.ne.s32.totalorder %s270, %s286
      %p288 = scmp.eq.s32.totalorder %s26, 0
      %p289 = por %p287, %p288
      %p290 = scmp.le.s32.totalorder 1, %s20
      %p291 = scmp.lt.s32.totalorder %s20, 3
      %p292 = pnand %p290, %p291
      %p293 = pneg %p292
      // Predicated region
      $region9: #{tpu_custom_call.1} parent=5 // pred_check
        _
      $region10: #{tpu_custom_call.1} parent=5 // pred_check_branch
        %295 = sbr.rel (%p292) target = $region12
      $region11: #{tpu_custom_call.1} parent=5 // pred_region
        %s296 = ssub.s32 %s20, 1
        // Predicated region
        $region13: #{tpu_custom_call.1} parent=11 // pred_check
          %p297 = pneg %p67
        $region14: #{tpu_custom_call.1} parent=11 // pred_check_branch
          %299 = sbr.rel (%p297) target = $region16
        $region15: #{tpu_custom_call.1} parent=11 // pred_region
          _
        $region16: #{tpu_custom_call.1} parent=11 // pred_fallthru
          _
        // Predicated region
        $region17: #{tpu_custom_call.1} parent=11 // pred_check
          %p300 = pneg %p88
        $region18: #{tpu_custom_call.1} parent=11 // pred_check_branch
          %302 = sbr.rel (%p300) target = $region20
        $region19: #{tpu_custom_call.1} parent=11 // pred_region
          _
        $region20: #{tpu_custom_call.1} parent=11 // pred_fallthru
          _
        // Predicated region
        $region21: #{tpu_custom_call.1} parent=11 // pred_check
          %p303 = pneg %p109
        $region22: #{tpu_custom_call.1} parent=11 // pred_check_branch
          %305 = sbr.rel (%p303) target = $region24
        $region23: #{tpu_custom_call.1} parent=11 // pred_region
          _
        $region24: #{tpu_custom_call.1} parent=11 // pred_fallthru
          _
        // Predicated region
        $region25: #{tpu_custom_call.1} parent=11 // pred_check
          %p306 = pneg %p130
        $region26: #{tpu_custom_call.1} parent=11 // pred_check_branch
          %308 = sbr.rel (%p306) target = $region28
        $region27: #{tpu_custom_call.1} parent=11 // pred_region
          _
        $region28: #{tpu_custom_call.1} parent=11 // pred_fallthru
          _
        // Predicated region
        $region29: #{tpu_custom_call.1} parent=11 // pred_check
          %p309 = pneg %p151
        $region30: #{tpu_custom_call.1} parent=11 // pred_check_branch
          %311 = sbr.rel (%p309) target = $region32
        $region31: #{tpu_custom_call.1} parent=11 // pred_region
          _
        $region32: #{tpu_custom_call.1} parent=11 // pred_fallthru
          _
        // Predicated region
        $region33: #{tpu_custom_call.1} parent=11 // pred_check
          %p312 = pneg %p172
        $region34: #{tpu_custom_call.1} parent=11 // pred_check_branch
          %314 = sbr.rel (%p312) target = $region36
        $region35: #{tpu_custom_call.1} parent=11 // pred_region
          _
        $region36: #{tpu_custom_call.1} parent=11 // pred_fallthru
          _
        // Predicated region
        $region37: #{tpu_custom_call.1} parent=11 // pred_check
          %p315 = pneg %p193
        $region38: #{tpu_custom_call.1} parent=11 // pred_check_branch
          %317 = sbr.rel (%p315) target = $region40
        $region39: #{tpu_custom_call.1} parent=11 // pred_region
          _
        $region40: #{tpu_custom_call.1} parent=11 // pred_fallthru
          _
        // Predicated region
        $region41: #{tpu_custom_call.1} parent=11 // pred_check
          %p318 = pneg %p214
        $region42: #{tpu_custom_call.1} parent=11 // pred_check_branch
          %320 = sbr.rel (%p318) target = $region44
        $region43: #{tpu_custom_call.1} parent=11 // pred_region
          _
        $region44: #{tpu_custom_call.1} parent=11 // pred_fallthru
          _
        // Predicated region
        $region45: #{tpu_custom_call.1} parent=11 // pred_check
          %p321 = pneg %p235
        $region46: #{tpu_custom_call.1} parent=11 // pred_check_branch
          %323 = sbr.rel (%p321) target = $region48
        $region47: #{tpu_custom_call.1} parent=11 // pred_region
          _
        $region48: #{tpu_custom_call.1} parent=11 // pred_fallthru
          _
        // Predicated region
        $region49: #{tpu_custom_call.1} parent=11 // pred_check
          %p324 = pneg %p256
        $region50: #{tpu_custom_call.1} parent=11 // pred_check_branch
          %326 = sbr.rel (%p324) target = $region52
        $region51: #{tpu_custom_call.1} parent=11 // pred_region
          _
        $region52: #{tpu_custom_call.1} parent=11 // pred_fallthru
          _
      $region12: #{tpu_custom_call.1} parent=5 // pred_fallthru
        _
      %p327 = scmp.lt.s32.totalorder %s20, 2
      // Predicated region
      $region53: #{tpu_custom_call.1} parent=5 // pred_check
        %p328 = pneg %p327
      $region54: #{tpu_custom_call.1} parent=5 // pred_check_branch
        %330 = sbr.rel (%p328) target = $region56
      $region55: #{tpu_custom_call.1} parent=5 // pred_region
        // Predicated region
        $region57: #{tpu_custom_call.1} parent=55 // pred_check
          %p331 = pneg %p40
        $region58: #{tpu_custom_call.1} parent=55 // pred_check_branch
          %333 = sbr.rel (%p331) target = $region60
        $region59: #{tpu_custom_call.1} parent=55 // pred_region
          %p334 = scmp.lt.s32.totalorder %s20, 1
          %s335 = scalar_select %p334, %s20, 1
          %s336 = smul.addr %s335, 2
          %s337 = smul.addr %s336, 4
          %s338 = scalar_lea.vmem %s0, %s337
        $region60: #{tpu_custom_call.1} parent=55 // pred_fallthru
          _
      $region56: #{tpu_custom_call.1} parent=5 // pred_fallthru
        _
      %p339 = scmp.le.s32.totalorder 1, %s20
      %p340 = scmp.lt.s32.totalorder %s20, 3
      %p341 = pnand %p339, %p340
      %p342 = pneg %p341
      // Predicated region
      $region61: #{tpu_custom_call.1} parent=5 // pred_check
        _
      $region62: #{tpu_custom_call.1} parent=5 // pred_check_branch
        %344 = sbr.rel (%p341) target = $region64
      $region63: #{tpu_custom_call.1} parent=5 // pred_region
        %s345 = ssub.s32 %s20, 1
        %p346 = scmp.lt.s32.totalorder %s25, 1
        %s347 = scalar_select %p346, %s25, 1
        %s348 = smul.addr %s347, 2
        %s349 = smul.addr %s348, 4
        %s350 = scalar_lea.vmem %s0, %s349
        %p351 = pneg %p46
        %p352 = pneg %p43
        %p353 = pneg %p67
        %p354 = pneg %p64
        %p355 = pneg %p88
        %p356 = pneg %p85
        %p357 = pneg %p109
        %p358 = pneg %p106
        %p359 = pneg %p130
        %p360 = pneg %p127
        %p361 = pneg %p151
        %p362 = pneg %p148
        %p363 = pneg %p172
        %p364 = pneg %p169
        %p365 = pneg %p193
        %p366 = pneg %p190
        %p367 = pneg %p214
        %p368 = pneg %p211
        %p369 = pneg %p235
        %p370 = pneg %p232
        %p371 = pneg %p256
        %p372 = pneg %p253
        %p373 = pneg %p282
        %p374 = pneg %p279
        %s375 = sand.u32 %s269, 1
        %s376 = scalar_lea.sflag [#allocation3], %s375
        %s377 = sand.u32 %s269, 1
        %s378 = smul.addr %s377, 8
        %s379 = scalar_lea.vmem [#allocation2], %s378
        %p380 = scmp.lt.s32.totalorder %s25, 1
        %s381 = scalar_select %p380, %s25, 1
        %s382 = smul.addr %s381, 2
        %s383 = smul.addr %s382, 4
        %s384 = scalar_lea.vmem %s0, %s383
        %v385 = vld [vmem:[%s384] sm:$0xff]
        %v386 = vld [vmem:[%s1] sm:$0xff]
        %v387 = vld [vmem:[%s1 + $0x8] sm:$0xff]
        %v388 = vld [vmem:[%s1 + $0x10] sm:$0xff]
        %v389 = vld [vmem:[%s1 + $0x18] sm:$0xff]
        %v390 = vld [vmem:[%s1 + $0x20] sm:$0xff]
        %v391 = vld [vmem:[%s1 + $0x28] sm:$0xff]
        %v392 = vld [vmem:[%s1 + $0x30] sm:$0xff]
        %v393 = vld [vmem:[%s1 + $0x38] sm:$0xff]
        %v394 = vld [vmem:[%s1 + $0x40] sm:$0xff]
        %v395 = vld [vmem:[%s1 + $0x48] sm:$0xff]
        %v396 = vld [vmem:[%s1 + $0x50] sm:$0xff]
        %v397 = vld [vmem:[%s1 + $0x58] sm:$0xff]
        %v398 = vld [vmem:[%s1 + $0x60] sm:$0xff]
        %v399 = vld [vmem:[%s1 + $0x68] sm:$0xff]
        %v400 = vld [vmem:[%s1 + $0x70] sm:$0xff]
        %v401 = vld [vmem:[%s1 + $0x78] sm:$0xff]
        %v402 = vld [vmem:[%s1 + $0x80] sm:$0xff]
        %v403 = vld [vmem:[%s1 + $0x88] sm:$0xff]
        %v404 = vld [vmem:[%s1 + $0x90] sm:$0xff]
        %v405 = vld [vmem:[%s1 + $0x98] sm:$0xff]
        %v406 = vld [vmem:[%s1 + $0xa0] sm:$0xff]
        %v407 = vld [vmem:[%s1 + $0xa8] sm:$0xff]
        %v408 = vld [vmem:[%s1 + $0xb0] sm:$0xff]
        %v409 = vld [vmem:[%s1 + $0xb8] sm:$0xff]
        %v410 = vld [vmem:[%s1 + $0xc0] sm:$0xff]
        %v411 = vld [vmem:[%s1 + $0xc8] sm:$0xff]
        %v412 = vld [vmem:[%s1 + $0xd0] sm:$0xff]
        %v413 = vld [vmem:[%s1 + $0xd8] sm:$0xff]
        %v414 = vld [vmem:[%s1 + $0xe0] sm:$0xff]
        %v415 = vld [vmem:[%s1 + $0xe8] sm:$0xff]
        %v416 = vld [vmem:[%s1 + $0xf0] sm:$0xff]
        %v417 = vld [vmem:[%s1 + $0xf8] sm:$0xff]
        %v419 = vcombine.high %v385, %v385
        %421 = vmatprep.subr.mxu0 0.0
        %422 = vmatpush1.msra.mxu0 %v386
        %423 = vmatprep.subr.mxu0 0.0
        %424 = vmatpush1.msra.mxu0 %v387
        %425 = vmatprep.subr.mxu0 0.0
        %426 = vmatpush1.msra.mxu0 %v388
        %427 = vmatprep.subr.mxu0 0.0
        %428 = vmatpush1.msra.mxu0 %v389
        %429 = vmatprep.subr.mxu0 0.0
        %430 = vmatpush1.msra.mxu0 %v390
        %431 = vmatprep.subr.mxu0 0.0
        %432 = vmatpush1.msra.mxu0 %v391
        %433 = vmatprep.subr.mxu0 0.0
        %434 = vmatpush1.msra.mxu0 %v392
        %435 = vmatprep.subr.mxu0 0.0
        %436 = vmatpush1.msra.mxu0 %v393
        %437 = vmatprep.subr.mxu0 0.0
        %438 = vmatpush1.msra.mxu0 %v394
        %439 = vmatprep.subr.mxu0 0.0
        %440 = vmatpush1.msra.mxu0 %v395
        %441 = vmatprep.subr.mxu0 0.0
        %442 = vmatpush1.msra.mxu0 %v396
        %443 = vmatprep.subr.mxu0 0.0
        %444 = vmatpush1.msra.mxu0 %v397
        %445 = vmatprep.subr.mxu0 0.0
        %446 = vmatpush1.msra.mxu0 %v398
        %447 = vmatprep.subr.mxu0 0.0
        %448 = vmatpush1.msra.mxu0 %v399
        %449 = vmatprep.subr.mxu0 0.0
        %450 = vmatpush1.msra.mxu0 %v400
        %451 = vmatprep.subr.mxu0 0.0
        %452 = vmatpush1.msra.mxu0 %v401
        %453 = vmatprep.subr.mxu0 0.0
        %454 = vmatpush1.msra.mxu0 %v402
        %455 = vmatprep.subr.mxu0 0.0
        %456 = vmatpush1.msra.mxu0 %v403
        %457 = vmatprep.subr.mxu0 0.0
        %458 = vmatpush1.msra.mxu0 %v404
        %459 = vmatprep.subr.mxu0 0.0
        %460 = vmatpush1.msra.mxu0 %v405
        %461 = vmatprep.subr.mxu0 0.0
        %462 = vmatpush1.msra.mxu0 %v406
        %463 = vmatprep.subr.mxu0 0.0
        %464 = vmatpush1.msra.mxu0 %v407
        %465 = vmatprep.subr.mxu0 0.0
        %466 = vmatpush1.msra.mxu0 %v408
        %467 = vmatprep.subr.mxu0 0.0
        %468 = vmatpush1.msra.mxu0 %v409
        %469 = vmatprep.subr.mxu0 0.0
        %470 = vmatpush1.msra.mxu0 %v410
        %471 = vmatprep.subr.mxu0 0.0
        %472 = vmatpush1.msra.mxu0 %v411
        %473 = vmatprep.subr.mxu0 0.0
        %474 = vmatpush1.msra.mxu0 %v412
        %475 = vmatprep.subr.mxu0 0.0
        %476 = vmatpush1.msra.mxu0 %v413
        %477 = vmatprep.subr.mxu0 0.0
        %478 = vmatpush1.msra.mxu0 %v414
        %479 = vmatprep.subr.mxu0 0.0
        %480 = vmatpush1.msra.mxu0 %v415
        %481 = vmatprep.subr.mxu0 0.0
        %482 = vmatpush1.msra.mxu0 %v416
        %483 = vmatprep.subr.mxu0 0.0
        %484 = vmatpush1.msra.mxu0 %v417
        %485 = vmatprep.mubr.f32.mxu0 %v419
        %486 = vmatmul.mubr.f32.gmra.mrb[0].mxu0 %v385
        %v487 = vpop.f32.mrb[0].mxu0
        %v488 = vadd.f32 0.0, %v487
        %v489 = vpop.f32.mrb[0].mxu0
        %490 = vdwg.mxu0
        %v491 = vld [vmem:[%s5] sm:$0xff]
        %vm492 = vcmask 31744
        %v494 = vsel %vm492, %v491, 0
        %vm496 = vcmask 1043456
        %v498 = vsel %vm496, %v488, 0
        %500 = vmatprep.subr.mxu0 0.0
        %501 = vmatpush1.msra.mxu0 %v498
        %502 = vmatprep.subr.mxu0 0.0
        %503 = vmatpush1.msra.mxu0 0.0
        %504 = vmatprep.subr.mxu0 0.0
        %505 = vmatpush1.msra.mxu0 0.0
        %506 = vmatprep.subr.mxu0 0.0
        %507 = vmatpush1.msra.mxu0 0.0
        %508 = vmatprep.subr.mxu0 0.0
        %509 = vmatpush1.msra.mxu0 0.0
        %510 = vmatprep.subr.mxu0 0.0
        %511 = vmatpush1.msra.mxu0 0.0
        %512 = vmatprep.subr.mxu0 0.0
        %513 = vmatpush1.msra.mxu0 0.0
        %514 = vmatprep.subr.mxu0 0.0
        %515 = vmatpush1.msra.mxu0 0.0
        %516 = vmatprep.subr.mxu0 0.0
        %517 = vmatpush1.msra.mxu0 0.0
        %518 = vmatprep.subr.mxu0 0.0
        %519 = vmatpush1.msra.mxu0 0.0
        %520 = vmatprep.subr.mxu0 0.0
        %521 = vmatpush1.msra.mxu0 0.0
        %522 = vmatprep.subr.mxu0 0.0
        %523 = vmatpush1.msra.mxu0 0.0
        %524 = vmatprep.subr.mxu0 0.0
        %525 = vmatpush1.msra.mxu0 0.0
        %526 = vmatprep.subr.mxu0 0.0
        %527 = vmatpush1.msra.mxu0 0.0
        %528 = vmatprep.subr.mxu0 0.0
        %529 = vmatpush1.msra.mxu0 0.0
        %530 = vmatprep.subr.mxu0 0.0
        %531 = vmatpush1.msra.mxu0 0.0
        %532 = vmatprep.subr.mxu0 0.0
        %533 = vmatpush1.msra.mxu0 0.0
        %534 = vmatprep.subr.mxu0 0.0
        %535 = vmatpush1.msra.mxu0 0.0
        %536 = vmatprep.subr.mxu0 0.0
        %537 = vmatpush1.msra.mxu0 0.0
        %538 = vmatprep.subr.mxu0 0.0
        %539 = vmatpush1.msra.mxu0 0.0
        %540 = vmatprep.subr.mxu0 0.0
        %541 = vmatpush1.msra.mxu0 0.0
        %542 = vmatprep.subr.mxu0 0.0
        %543 = vmatpush1.msra.mxu0 0.0
        %544 = vmatprep.subr.mxu0 0.0
        %545 = vmatpush1.msra.mxu0 0.0
        %546 = vmatprep.subr.mxu0 0.0
        %547 = vmatpush1.msra.mxu0 0.0
        %548 = vmatprep.subr.mxu0 0.0
        %549 = vmatpush1.msra.mxu0 0.0
        %550 = vmatprep.subr.mxu0 0.0
        %551 = vmatpush1.msra.mxu0 0.0
        %552 = vmatprep.subr.mxu0 0.0
        %553 = vmatpush1.msra.mxu0 0.0
        %554 = vmatprep.subr.mxu0 0.0
        %555 = vmatpush1.msra.mxu0 0.0
        %556 = vmatprep.subr.mxu0 0.0
        %557 = vmatpush1.msra.mxu0 0.0
        %558 = vmatprep.subr.mxu0 0.0
        %559 = vmatpush1.msra.mxu0 0.0
        %560 = vmatprep.subr.mxu0 0.0
        %561 = vmatpush1.msra.mxu0 0.0
        %562 = vmatprep.subr.mxu0 0.0
        %563 = vmatpush1.msra.mxu0 0.0
        %564 = vmatprep.mubr.f32.mxu0 0.0
        %565 = vmatmul.mubr.f32.gmra.mrb[0].mxu0 %v494
        %v566 = vpop.f32.mrb[0].mxu0
        %v567 = vadd.f32 0.0, %v566
        %v568 = vpop.f32.mrb[0].mxu0
        %569 = vdwg.mxu0
        %v570 = vld [vmem:[%s2] sm:$0x1]
        %v572 = vlaneseq
        %v573 = vshrl.u32 %v572, 7
        %v574 = vsub.s32 0, %v573
        %v575 = vrot.slane %v570, %v574
        %v577 = vmul.f32 %v567, %v575
        %v578 = vld [vmem:[%s6] sm:$0xff]
        %580 = vset.pattern.permute.xlu0 0
        %581 = vperm.xlu0 %580, %v578
        %v582 = vpop.permute.xlu0 %581
        %v584 = vadd.f32 %v577, %v582
        %v585 = vadd.f32 %v584, 3.0
        %v586 = vmax.f32 %v585, 0.0
        %v587 = vmin.f32 %v586, 6.0
        %v588 = vmul.f32 %v584, %v587
        %v589 = vmul.f32 %v588, 0.16666667
        %vm590 = vcmp.gt.f32.partialorder %v589, 0.1
        %v591 = vsel %vm590, %v589, 0.0
        %v592 = vadd.f32 %v591, %v591
        %v593 = vld [vmem:[%s7] sm:$0xf]
        %v594 = vld [vmem:[%s8] sm:$0xf]
        %596 = vset.pattern.permute.xlu0 0
        %597 = vperm.xlu0 %596, %v594
        %v598 = vpop.permute.xlu0 %597
        %vm600 = vcmask 64512
        %v602 = vsel %vm600, %v593, 0
        %604 = vmatprep.subr.mxu0 0.0
        %605 = vmatpush1.msra.mxu0 %v592
        %606 = vmatprep.subr.mxu0 0.0
        %607 = vmatpush1.msra.mxu0 0.0
        %608 = vmatprep.subr.mxu0 0.0
        %609 = vmatpush1.msra.mxu0 0.0
        %610 = vmatprep.subr.mxu0 0.0
        %611 = vmatpush1.msra.mxu0 0.0
        %612 = vmatprep.subr.mxu0 0.0
        %613 = vmatpush1.msra.mxu0 0.0
        %614 = vmatprep.subr.mxu0 0.0
        %615 = vmatpush1.msra.mxu0 0.0
        %616 = vmatprep.subr.mxu0 0.0
        %617 = vmatpush1.msra.mxu0 0.0
        %618 = vmatprep.subr.mxu0 0.0
        %619 = vmatpush1.msra.mxu0 0.0
        %620 = vmatprep.subr.mxu0 0.0
        %621 = vmatpush1.msra.mxu0 0.0
        %622 = vmatprep.subr.mxu0 0.0
        %623 = vmatpush1.msra.mxu0 0.0
        %624 = vmatprep.subr.mxu0 0.0
        %625 = vmatpush1.msra.mxu0 0.0
        %626 = vmatprep.subr.mxu0 0.0
        %627 = vmatpush1.msra.mxu0 0.0
        %628 = vmatprep.subr.mxu0 0.0
        %629 = vmatpush1.msra.mxu0 0.0
        %630 = vmatprep.subr.mxu0 0.0
        %631 = vmatpush1.msra.mxu0 0.0
        %632 = vmatprep.subr.mxu0 0.0
        %633 = vmatpush1.msra.mxu0 0.0
        %634 = vmatprep.subr.mxu0 0.0
        %635 = vmatpush1.msra.mxu0 0.0
        %636 = vmatprep.subr.mxu0 0.0
        %637 = vmatpush1.msra.mxu0 0.0
        %638 = vmatprep.subr.mxu0 0.0
        %639 = vmatpush1.msra.mxu0 0.0
        %640 = vmatprep.subr.mxu0 0.0
        %641 = vmatpush1.msra.mxu0 0.0
        %642 = vmatprep.subr.mxu0 0.0
        %643 = vmatpush1.msra.mxu0 0.0
        %644 = vmatprep.subr.mxu0 0.0
        %645 = vmatpush1.msra.mxu0 0.0
        %646 = vmatprep.subr.mxu0 0.0
        %647 = vmatpush1.msra.mxu0 0.0
        %648 = vmatprep.subr.mxu0 0.0
        %649 = vmatpush1.msra.mxu0 0.0
        %650 = vmatprep.subr.mxu0 0.0
        %651 = vmatpush1.msra.mxu0 0.0
        %652 = vmatprep.subr.mxu0 0.0
        %653 = vmatpush1.msra.mxu0 0.0
        %654 = vmatprep.subr.mxu0 0.0
        %655 = vmatpush1.msra.mxu0 0.0
        %656 = vmatprep.subr.mxu0 0.0
        %657 = vmatpush1.msra.mxu0 0.0
        %658 = vmatprep.subr.mxu0 0.0
        %659 = vmatpush1.msra.mxu0 0.0
        %660 = vmatprep.subr.mxu0 0.0
        %661 = vmatpush1.msra.mxu0 0.0
        %662 = vmatprep.subr.mxu0 0.0
        %663 = vmatpush1.msra.mxu0 0.0
        %664 = vmatprep.subr.mxu0 0.0
        %665 = vmatpush1.msra.mxu0 0.0
        %666 = vmatprep.subr.mxu0 0.0
        %667 = vmatpush1.msra.mxu0 0.0
        %668 = vmatprep.mubr.f32.mxu0 0.0
        %669 = vmatmul.mubr.f32.gmra.mrb[0].mxu0 %v602
        %v670 = vpop.f32.mrb[0].mxu0
        %v671 = vadd.f32 %v598, %v670
        %v672 = vpop.f32.mrb[0].mxu0
        %673 = vdwg.mxu0
        %v674 = vxor.u32 %v671, 2147483648
        %v675 = vmul.f32 %v674, 1.442695
        %v676 = vpow.pop %v675
        %v677 = vadd.f32 %v676, 1.0
        %v678 = vrcp.pop %v677
        %v679 = vmul.f32 1.0, %v678
        %v680 = vld [vmem:[%s9] sm:$0xf]
        %v681 = vld [vmem:[%s10] sm:$0xf]
        %683 = vset.pattern.permute.xlu0 0
        %684 = vperm.xlu0 %683, %v681
        %v685 = vpop.permute.xlu0 %684
        %688 = vrot.lane.b32.xlu0 %v592, 112
        %v689 = vpop.permute.xlu0 %688
        %v692 = vsel %vm600, %v680, 0
        %694 = vmatprep.subr.mxu0 0.0
        %695 = vmatpush1.msra.mxu0 %v689
        %696 = vmatprep.subr.mxu0 0.0
        %697 = vmatpush1.msra.mxu0 0.0
        %698 = vmatprep.subr.mxu0 0.0
        %699 = vmatpush1.msra.mxu0 0.0
        %700 = vmatprep.subr.mxu0 0.0
        %701 = vmatpush1.msra.mxu0 0.0
        %702 = vmatprep.subr.mxu0 0.0
        %703 = vmatpush1.msra.mxu0 0.0
        %704 = vmatprep.subr.mxu0 0.0
        %705 = vmatpush1.msra.mxu0 0.0
        %706 = vmatprep.subr.mxu0 0.0
        %707 = vmatpush1.msra.mxu0 0.0
        %708 = vmatprep.subr.mxu0 0.0
        %709 = vmatpush1.msra.mxu0 0.0
        %710 = vmatprep.subr.mxu0 0.0
        %711 = vmatpush1.msra.mxu0 0.0
        %712 = vmatprep.subr.mxu0 0.0
        %713 = vmatpush1.msra.mxu0 0.0
        %714 = vmatprep.subr.mxu0 0.0
        %715 = vmatpush1.msra.mxu0 0.0
        %716 = vmatprep.subr.mxu0 0.0
        %717 = vmatpush1.msra.mxu0 0.0
        %718 = vmatprep.subr.mxu0 0.0
        %719 = vmatpush1.msra.mxu0 0.0
        %720 = vmatprep.subr.mxu0 0.0
        %721 = vmatpush1.msra.mxu0 0.0
        %722 = vmatprep.subr.mxu0 0.0
        %723 = vmatpush1.msra.mxu0 0.0
        %724 = vmatprep.subr.mxu0 0.0
        %725 = vmatpush1.msra.mxu0 0.0
        %726 = vmatprep.subr.mxu0 0.0
        %727 = vmatpush1.msra.mxu0 0.0
        %728 = vmatprep.subr.mxu0 0.0
        %729 = vmatpush1.msra.mxu0 0.0
        %730 = vmatprep.subr.mxu0 0.0
        %731 = vmatpush1.msra.mxu0 0.0
        %732 = vmatprep.subr.mxu0 0.0
        %733 = vmatpush1.msra.mxu0 0.0
        %734 = vmatprep.subr.mxu0 0.0
        %735 = vmatpush1.msra.mxu0 0.0
        %736 = vmatprep.subr.mxu0 0.0
        %737 = vmatpush1.msra.mxu0 0.0
        %738 = vmatprep.subr.mxu0 0.0
        %739 = vmatpush1.msra.mxu0 0.0
        %740 = vmatprep.subr.mxu0 0.0
        %741 = vmatpush1.msra.mxu0 0.0
        %742 = vmatprep.subr.mxu0 0.0
        %743 = vmatpush1.msra.mxu0 0.0
        %744 = vmatprep.subr.mxu0 0.0
        %745 = vmatpush1.msra.mxu0 0.0
        %746 = vmatprep.subr.mxu0 0.0
        %747 = vmatpush1.msra.mxu0 0.0
        %748 = vmatprep.subr.mxu0 0.0
        %749 = vmatpush1.msra.mxu0 0.0
        %750 = vmatprep.subr.mxu0 0.0
        %751 = vmatpush1.msra.mxu0 0.0
        %752 = vmatprep.subr.mxu0 0.0
        %753 = vmatpush1.msra.mxu0 0.0
        %754 = vmatprep.subr.mxu0 0.0
        %755 = vmatpush1.msra.mxu0 0.0
        %756 = vmatprep.subr.mxu0 0.0
        %757 = vmatpush1.msra.mxu0 0.0
        %758 = vmatprep.mubr.f32.mxu0 0.0
        %759 = vmatmul.mubr.f32.gmra.mrb[0].mxu0 %v692
        %v760 = vpop.f32.mrb[0].mxu0
        %v761 = vadd.f32 %v685, %v760
        %v762 = vpop.f32.mrb[0].mxu0
        %763 = vdwg.mxu0
        %v764 = vxor.u32 %v761, 2147483648
        %v765 = vmul.f32 %v764, 1.442695
        %v766 = vpow.pop %v765
        %v767 = vadd.f32 %v766, 1.0
        %v768 = vrcp.pop %v767
        %v769 = vmul.f32 1.0, %v768
        %v770 = vld [vmem:[%s3] sm:$0xff]
        %v771 = vld [vmem:[%s3 + $0x8] sm:$0xff]
        %v772 = vld [vmem:[%s3 + $0x10] sm:$0xff]
        %v773 = vld [vmem:[%s3 + $0x18] sm:$0xff]
        %vm774 = vcmask 130048
        %v776 = vsel %vm774, %v679, 0
        %778 = vmatprep.subr.mxu0 %v771
        %779 = vmatpush1.msra.mxu0 %v770
        %780 = vmatprep.subr.mxu0 %v773
        %781 = vmatpush1.msra.mxu0 %v772
        %782 = vmatprep.subr.mxu0 0.0
        %783 = vmatpush1.msra.mxu0 0.0
        %784 = vmatprep.subr.mxu0 0.0
        %785 = vmatpush1.msra.mxu0 0.0
        %786 = vmatprep.subr.mxu0 0.0
        %787 = vmatpush1.msra.mxu0 0.0
        %788 = vmatprep.subr.mxu0 0.0
        %789 = vmatpush1.msra.mxu0 0.0
        %790 = vmatprep.subr.mxu0 0.0
        %791 = vmatpush1.msra.mxu0 0.0
        %792 = vmatprep.subr.mxu0 0.0
        %793 = vmatpush1.msra.mxu0 0.0
        %794 = vmatprep.subr.mxu0 0.0
        %795 = vmatpush1.msra.mxu0 0.0
        %796 = vmatprep.subr.mxu0 0.0
        %797 = vmatpush1.msra.mxu0 0.0
        %798 = vmatprep.subr.mxu0 0.0
        %799 = vmatpush1.msra.mxu0 0.0
        %800 = vmatprep.subr.mxu0 0.0
        %801 = vmatpush1.msra.mxu0 0.0
        %802 = vmatprep.subr.mxu0 0.0
        %803 = vmatpush1.msra.mxu0 0.0
        %804 = vmatprep.subr.mxu0 0.0
        %805 = vmatpush1.msra.mxu0 0.0
        %806 = vmatprep.subr.mxu0 0.0
        %807 = vmatpush1.msra.mxu0 0.0
        %808 = vmatprep.subr.mxu0 0.0
        %809 = vmatpush1.msra.mxu0 0.0
        %810 = vmatprep.subr.mxu0 0.0
        %811 = vmatpush1.msra.mxu0 0.0
        %812 = vmatprep.subr.mxu0 0.0
        %813 = vmatpush1.msra.mxu0 0.0
        %814 = vmatprep.subr.mxu0 0.0
        %815 = vmatpush1.msra.mxu0 0.0
        %816 = vmatprep.subr.mxu0 0.0
        %817 = vmatpush1.msra.mxu0 0.0
        %818 = vmatprep.subr.mxu0 0.0
        %819 = vmatpush1.msra.mxu0 0.0
        %820 = vmatprep.subr.mxu0 0.0
        %821 = vmatpush1.msra.mxu0 0.0
        %822 = vmatprep.subr.mxu0 0.0
        %823 = vmatpush1.msra.mxu0 0.0
        %824 = vmatprep.subr.mxu0 0.0
        %825 = vmatpush1.msra.mxu0 0.0
        %826 = vmatprep.subr.mxu0 0.0
        %827 = vmatpush1.msra.mxu0 0.0
        %828 = vmatprep.subr.mxu0 0.0
        %829 = vmatpush1.msra.mxu0 0.0
        %830 = vmatprep.subr.mxu0 0.0
        %831 = vmatpush1.msra.mxu0 0.0
        %832 = vmatprep.subr.mxu0 0.0
        %833 = vmatpush1.msra.mxu0 0.0
        %834 = vmatprep.subr.mxu0 0.0
        %835 = vmatpush1.msra.mxu0 0.0
        %836 = vmatprep.subr.mxu0 0.0
        %837 = vmatpush1.msra.mxu0 0.0
        %838 = vmatprep.subr.mxu0 0.0
        %839 = vmatpush1.msra.mxu0 0.0
        %840 = vmatprep.subr.mxu0 0.0
        %841 = vmatpush1.msra.mxu0 0.0
        %842 = vmatprep.mubr.f32.mxu0 0.0
        %843 = vmatmul.mubr.f32.gmra.mrb[0].mxu0 %v776
        %v844 = vpop.f32.mrb[0].mxu0
        %v845 = vadd.f32 0.0, %v844
        %v846 = vpop.f32.mrb[0].mxu0
        %v847 = vadd.f32 0.0, %v846
        %848 = vdwg.mxu0
        %v849 = vld [vmem:[%s4] sm:$0xff]
        %v850 = vld [vmem:[%s4 + $0x8] sm:$0xff]
        %v851 = vld [vmem:[%s4 + $0x10] sm:$0xff]
        %v852 = vld [vmem:[%s4 + $0x18] sm:$0xff]
        %v854 = vsel %vm774, %v769, 0
        %856 = vmatprep.subr.mxu0 %v850
        %857 = vmatpush1.msra.mxu0 %v849
        %858 = vmatprep.subr.mxu0 %v852
        %859 = vmatpush1.msra.mxu0 %v851
        %860 = vmatprep.subr.mxu0 0.0
        %861 = vmatpush1.msra.mxu0 0.0
        %862 = vmatprep.subr.mxu0 0.0
        %863 = vmatpush1.msra.mxu0 0.0
        %864 = vmatprep.subr.mxu0 0.0
        %865 = vmatpush1.msra.mxu0 0.0
        %866 = vmatprep.subr.mxu0 0.0
        %867 = vmatpush1.msra.mxu0 0.0
        %868 = vmatprep.subr.mxu0 0.0
        %869 = vmatpush1.msra.mxu0 0.0
        %870 = vmatprep.subr.mxu0 0.0
        %871 = vmatpush1.msra.mxu0 0.0
        %872 = vmatprep.subr.mxu0 0.0
        %873 = vmatpush1.msra.mxu0 0.0
        %874 = vmatprep.subr.mxu0 0.0
        %875 = vmatpush1.msra.mxu0 0.0
        %876 = vmatprep.subr.mxu0 0.0
        %877 = vmatpush1.msra.mxu0 0.0
        %878 = vmatprep.subr.mxu0 0.0
        %879 = vmatpush1.msra.mxu0 0.0
        %880 = vmatprep.subr.mxu0 0.0
        %881 = vmatpush1.msra.mxu0 0.0
        %882 = vmatprep.subr.mxu0 0.0
        %883 = vmatpush1.msra.mxu0 0.0
        %884 = vmatprep.subr.mxu0 0.0
        %885 = vmatpush1.msra.mxu0 0.0
        %886 = vmatprep.subr.mxu0 0.0
        %887 = vmatpush1.msra.mxu0 0.0
        %888 = vmatprep.subr.mxu0 0.0
        %889 = vmatpush1.msra.mxu0 0.0
        %890 = vmatprep.subr.mxu0 0.0
        %891 = vmatpush1.msra.mxu0 0.0
        %892 = vmatprep.subr.mxu0 0.0
        %893 = vmatpush1.msra.mxu0 0.0
        %894 = vmatprep.subr.mxu0 0.0
        %895 = vmatpush1.msra.mxu0 0.0
        %896 = vmatprep.subr.mxu0 0.0
        %897 = vmatpush1.msra.mxu0 0.0
        %898 = vmatprep.subr.mxu0 0.0
        %899 = vmatpush1.msra.mxu0 0.0
        %900 = vmatprep.subr.mxu0 0.0
        %901 = vmatpush1.msra.mxu0 0.0
        %902 = vmatprep.subr.mxu0 0.0
        %903 = vmatpush1.msra.mxu0 0.0
        %904 = vmatprep.subr.mxu0 0.0
        %905 = vmatpush1.msra.mxu0 0.0
        %906 = vmatprep.subr.mxu0 0.0
        %907 = vmatpush1.msra.mxu0 0.0
        %908 = vmatprep.subr.mxu0 0.0
        %909 = vmatpush1.msra.mxu0 0.0
        %910 = vmatprep.subr.mxu0 0.0
        %911 = vmatpush1.msra.mxu0 0.0
        %912 = vmatprep.subr.mxu0 0.0
        %913 = vmatpush1.msra.mxu0 0.0
        %914 = vmatprep.subr.mxu0 0.0
        %915 = vmatpush1.msra.mxu0 0.0
        %916 = vmatprep.subr.mxu0 0.0
        %917 = vmatpush1.msra.mxu0 0.0
        %918 = vmatprep.subr.mxu0 0.0
        %919 = vmatpush1.msra.mxu0 0.0
        %920 = vmatprep.mubr.f32.mxu0 0.0
        %921 = vmatmul.mubr.f32.gmra.mrb[0].mxu0 %v854
        %v922 = vpop.f32.mrb[0].mxu0
        %v923 = vadd.f32 0.0, %v922
        %v924 = vpop.f32.mrb[0].mxu0
        %v925 = vadd.f32 0.0, %v924
        %926 = vdwg.mxu0
        %v927 = vmul.f32 %v845, %v923
        %v928 = vmul.f32 %v847, %v925
        %v931 = vcombine.low %v927, %v928
        %v933 = vmul.f32 %v385, %v931
        %934 = vst [vmem:[%s379] sm:$0xff] %v933
        %s935 = sand.u32 %s269, 1
        %s936 = scalar_lea.sflag [#allocation3], %s935
        %s937 = sand.u32 %s269, 1
        %s938 = smul.addr %s937, 8
        %s939 = scalar_lea.vmem [#allocation2], %s938
        // Predicated region
        $region65: #{tpu_custom_call.1} parent=63 // pred_check
          %p940 = pneg %p279
        $region66: #{tpu_custom_call.1} parent=63 // pred_check_branch
          %942 = sbr.rel (%p940) target = $region68
        $region67: #{tpu_custom_call.1} parent=63 // pred_region
          %s944 = ssub.s32 128, 128
          %945 = vsyncadd %s936, %s944
          %s946 = smul.addr %s25, 2
          %s947 = smul.addr %s946, 64
          %s948 = scalar_lea.hbm %s11, %s947
          %s950 = sshll.u32 %s939, 4
          %s951 = int_to_ptr.vmem [resolvable:$true] %s950
          %953 = dma.vmem_to_hbm [thread:$0]  %s951, 128, %s948, %s936
        $region68: #{tpu_custom_call.1} parent=63 // pred_fallthru
          _
      $region64: #{tpu_custom_call.1} parent=5 // pred_fallthru
        _
      %p954 = scmp.le.s32.totalorder 2, %s20
      // Predicated region
      $region69: #{tpu_custom_call.1} parent=5 // pred_check
        %p955 = pneg %p954
      $region70: #{tpu_custom_call.1} parent=5 // pred_check_branch
        %957 = sbr.rel (%p955) target = $region72
      $region71: #{tpu_custom_call.1} parent=5 // pred_region
        %s958 = ssub.s32 %s20, 2
        // Predicated region
        $region73: #{tpu_custom_call.1} parent=71 // pred_check
          %p959 = pneg %p285
        $region74: #{tpu_custom_call.1} parent=71 // pred_check_branch
          %961 = sbr.rel (%p959) target = $region76
        $region75: #{tpu_custom_call.1} parent=71 // pred_region
          %s962 = sand.u32 %s270, 1
          %s963 = scalar_lea.sflag [#allocation3], %s962
          %s964 = sand.u32 %s270, 1
          %s965 = smul.addr %s964, 8
          %s966 = scalar_lea.vmem [#allocation2], %s965
          %967 = dma.done %s963, 128
        $region76: #{tpu_custom_call.1} parent=71 // pred_fallthru
          _
      $region72: #{tpu_custom_call.1} parent=5 // pred_fallthru
        _
    $region6: #{tpu_custom_call.1} parent=1 // loop_footer
      %s24 = sadd.s32 1, %s20
    $region7: #{tpu_custom_call.1} parent=1 // loop_footer_branch
      %19 = sbr.rel target = $region3
    $region8: #{tpu_custom_call.1} parent=1 // loop_exit
      _
    %968 = vsyncpa [#allocation3], 1
    %s969 = scalar_lea.sflag [#allocation3], 1
    %970 = vsyncpa %s969, 1

</llo_original>
